<compile_context>
chip_gen: v5e
topology: v5e:2x2
jax: 0.10.0
libtpu: 0.0.40
codegen_flags: <defaults>
</compile_context>

<pallas_src>
import functools

import jax
import jax.numpy as jnp
from jax.experimental import pallas as pl
from jax.experimental.pallas import tpu as pltpu


# ----------------------------------------------------------------------------
# Fused coef|freq 3x3 conv (padding=1): per-batch im2col -> ONE K=9*Cin MXU
# matmul with a lane-dense (HW, 2*D) output, emitted directly in bf16.
# ----------------------------------------------------------------------------
def _conv3x3_kernel(xpad_ref, w_ref, b_ref, out_ref, *, H, W):
    x = xpad_ref[0]                                    # (H+2, W+2, Cin)
    Cin = x.shape[-1]
    # Pack the 9 taps along K (im2col) so the MXU sees one long-K matmul
    # instead of 9 under-filled K=Cin passes.
    patches = [x[dy:dy + H, dx:dx + W, :].reshape(H * W, Cin)
               for dy in range(3) for dx in range(3)]
    im2col = jnp.concatenate(patches, axis=-1)         # (HW, 9*Cin)
    acc = jnp.dot(im2col, w_ref[...], preferred_element_type=jnp.float32)
    out_ref[0] = (acc + b_ref[...]).astype(out_ref.dtype)


def conv3x3(x_nhwc, w_packed, bias, *, out_dtype, vmem_limit):
    """x_nhwc: (B, H, W, Cin), w_packed: (9*Cin, Dout) -> (B, H*W, Dout)."""
    B, H, W, Cin = x_nhwc.shape
    K, Dout = w_packed.shape
    xpad = jnp.pad(x_nhwc, ((0, 0), (1, 1), (1, 1), (0, 0)))
    bias2 = bias.reshape(1, Dout).astype(jnp.float32)
    # TODO(synk): for large H*W, tile spatially (row stripes with a 1-row halo
    # via manual DMA) so blocks fit v7x's 64 MiB VMEM and both TCs run at B=1.
    return pl.pallas_call(
        functools.partial(_conv3x3_kernel, H=H, W=W),
        out_shape=jax.ShapeDtypeStruct((B, H * W, Dout), out_dtype),
        grid=(B,),
        in_specs=[
            pl.BlockSpec((1, H + 2, W + 2, Cin), lambda b: (b, 0, 0, 0)),
            pl.BlockSpec((K, Dout), lambda b: (0, 0)),
            pl.BlockSpec((1, Dout), lambda b: (0, 0)),
        ],
        out_specs=pl.BlockSpec((1, H * W, Dout), lambda b: (b, 0, 0)),
        compiler_params=pltpu.CompilerParams(
            dimension_semantics=("parallel",),
            vmem_limit_bytes=vmem_limit),
    )(xpad, w_packed, bias2)


# ----------------------------------------------------------------------------
# query_rgb kernel: all four corner nearest-gathers as one stacked bf16
# one-hot MXU matmul against the combined (HW, 2*D) coef|freq buffer, LTE
# frequency modulation (128-aligned static lane slices), phase, cos/sin, area
# blending (split cos/sin halves -> no lane concat), a single hoisted imnet
# matmul pair, and the bilinear border-padded residual sample of the input.
# ----------------------------------------------------------------------------
def _query_kernel(cf_ref, inp_ref, coord_ref, cell_ref, phase_w_ref,
                  imnet_w_ref, imnet_b_ref, out_ref, *, H, W, D):
    HW = H * W
    Dh = D // 2
    cf = cf_ref[0]                       # (HW, 2D) bf16: coef | f_even | f_odd
    inp_flat = inp_ref[0]                # (HW, Cpad) bf16
    coord = coord_ref[0]                 # (TQ, 2) f32
    cell = cell_ref[0]                   # (TQ, 2) f32
    TQ = coord.shape[0]

    c0 = coord[:, 0:1]                   # row coordinate (H axis)
    c1 = coord[:, 1:2]                   # col coordinate (W axis)

    # phase(rel_cell) — identical for all 4 shifted taps.
    phase_out = ((cell[:, 0:1] * H) * phase_w_ref[0:1, :]
                 + (cell[:, 1:2] * W) * phase_w_ref[1:2, :])        # (TQ, Dh)

    rx = 1.0 / H                         # 2 / H / 2
    ry = 1.0 / W
    eps = 1e-6

    col_iota = jax.lax.broadcasted_iota(jnp.int32, (TQ, HW), 1)

    onehots, rel0s, rel1s, areas = [], [], [], []
    for vx in (-1.0, 1.0):
        for vy in (-1.0, 1.0):
            cc0 = jnp.clip(c0 + vx * rx + eps, -1.0 + 1e-6, 1.0 - 1e-6)
            cc1 = jnp.clip(c1 + vy * ry + eps, -1.0 + 1e-6, 1.0 - 1e-6)
            # grid_sample mode='nearest', align_corners=False
            # (floor(x+0.5): differs from round-half-even only at exact ties,
            #  which the eps shift makes measure-zero)
            iy = jnp.clip(jnp.floor(((cc0 + 1.0) * H - 1.0) * 0.5 + 0.5),
                          0, H - 1).astype(jnp.int32)
            ix = jnp.clip(jnp.floor(((cc1 + 1.0) * W - 1.0) * 0.5 + 0.5),
                          0, W - 1).astype(jnp.int32)
            onehots.append(((iy * W + ix) == col_iota).astype(jnp.bfloat16))
            # nearest sample of feat_coord == pixel-center coords of (iy, ix)
            qc0 = (2.0 * iy.astype(jnp.float32) + 1.0) / H - 1.0
            qc1 = (2.0 * ix.astype(jnp.float32) + 1.0) / W - 1.0
            rel0 = (c0 - qc0) * H                                   # (TQ, 1)
            rel1 = (c1 - qc1) * W
            rel0s.append(rel0)
            rel1s.append(rel1)
            areas.append(jnp.abs(rel0 * rel1) + 1e-9)

    # One stacked bf16 (4*TQ, HW) x (HW, 2D) gather matmul for all 4 corners.
    onehot_all = jnp.concatenate(onehots, axis=0)                   # (4TQ, HW)
    gathered = jnp.dot(onehot_all, cf, preferred_element_type=jnp.float32)

    tot = areas[0] + areas[1] + areas[2] + areas[3]
    inv_tot = pl.reciprocal(tot, approx=True)
    # area swap: 0<->3, 1<->2
    w_blend = (areas[3] * inv_tot, areas[2] * inv_tot,
               areas[1] * inv_tot, areas[0] * inv_tot)

    # Keep cos/sin halves separate: no per-corner lane concat, and the imnet
    # matmul is hoisted out of the corner loop as two K=Dh matmuls.
    blended_cos = jnp.zeros((TQ, Dh), jnp.float32)
    blended_sin = jnp.zeros((TQ, Dh), jnp.float32)
    for i in range(4):
        g = gathered[i * TQ:(i + 1) * TQ, :]
        coef_c = g[:, :Dh]               # coef columns multiplying cos
        coef_s = g[:, Dh:D]              # coef columns multiplying sin
        f_even = g[:, D:D + Dh]          # freq columns 0,2,4,... (pre-permuted)
        f_odd = g[:, D + Dh:]            # freq columns 1,3,5,...
        fr = f_even * rel0s[i] + f_odd * rel1s[i] + phase_out       # (TQ, Dh)
        blended_cos = blended_cos + w_blend[i] * (coef_c * jnp.cos(jnp.pi * fr))
        blended_sin = blended_sin + w_blend[i] * (coef_s * jnp.sin(jnp.pi * fr))

    # TODO(synk): blending before the imnet matmul is exact only because the
    # stand-in imnet is a single Linear (area weights sum to 1); restore
    # per-corner matmuls if a real MLP imnet is plugged in.
    ret = (jnp.dot(blended_cos, imnet_w_ref[:Dh, :],
                   preferred_element_type=jnp.float32)
           + jnp.dot(blended_sin, imnet_w_ref[Dh:, :],
                     preferred_element_type=jnp.float32)
           + imnet_b_ref[...])

    # final grid_sample(self.inp, ..., mode='bilinear', padding_mode='border')
    fy = jnp.clip(((c0 + 1.0) * H - 1.0) * 0.5, 0.0, H - 1.0)
    fx = jnp.clip(((c1 + 1.0) * W - 1.0) * 0.5, 0.0, W - 1.0)
    y0 = jnp.floor(fy)
    x0 = jnp.floor(fx)
    wy1 = fy - y0
    wx1 = fx - x0
    wy0 = 1.0 - wy1
    wx0 = 1.0 - wx1
    y0i = y0.astype(jnp.int32)
    x0i = x0.astype(jnp.int32)
    y1i = jnp.minimum(y0i + 1, H - 1)
    x1i = jnp.minimum(x0i + 1, W - 1)

    def oh(iy_, ix_):
        return ((iy_ * W + ix_) == col_iota).astype(jnp.float32)

    smat = ((wy0 * wx0) * oh(y0i, x0i) + (wy0 * wx1) * oh(y0i, x1i)
            + (wy1 * wx0) * oh(y1i, x0i) + (wy1 * wx1) * oh(y1i, x1i))
    bil = jnp.dot(smat.astype(jnp.bfloat16), inp_flat,
                  preferred_element_type=jnp.float32)

    out_ref[0] = ret + bil


def lte_forward(inp_nchw, coord, cell, params, *, use_bf16_conv=False,
                tq_max=512):
    B, Cin, H, W = inp_nchw.shape
    x_nhwc = jnp.transpose(inp_nchw, (0, 2, 3, 1)).astype(jnp.float32)

    D = params['coef_w'].shape[-1]
    Dh = D // 2
    Cout = params['imnet_w'].shape[-1]
    assert Cout == Cin, "stand-in imnet output must match input channels"
    Q = coord.shape[1]

    # Lane-dense output: pad the 96-wide channel dim up to a multiple of 128
    # (padded columns are zero; sliced off after the pallas_call).
    Cpad = ((Cout + 127) // 128) * 128

    # Pre-permute the freq conv's output columns (even-index frequencies first,
    # odd second) so the kernel can take f_even / f_odd as static lane slices,
    # then fuse coef|freq into ONE conv with a lane-dense 2*D-wide output and
    # reshape the 9 taps into a single (9*Cin, 2D) K-packed weight.
    freq_w_p = jnp.concatenate([params['freq_w'][..., 0::2],
                                params['freq_w'][..., 1::2]], axis=-1)
    freq_b_p = jnp.concatenate([params['freq_b'][0::2],
                                params['freq_b'][1::2]], axis=0)
    conv_w = jnp.concatenate([params['coef_w'], freq_w_p], axis=-1)  # (9,Cin,2D)
    conv_b = jnp.concatenate([params['coef_b'], freq_b_p], axis=0)   # (2D,)
    conv_w_packed = conv_w.reshape(9 * Cin, 2 * D)                   # (9Cin,2D)

    # Generation-aware VMEM budget (v5e/v6e: 128 MiB, v7x: 64 MiB physical).
    try:
        vmem_cap = int(pltpu.get_tpu_info().vmem_capacity_bytes)
    except Exception:
        vmem_cap = 64 * 1024 * 1024
    vmem_limit = min((vmem_cap * 3) // 4, 100 * 1024 * 1024)

    conv_dtype = jnp.bfloat16 if use_bf16_conv else jnp.float32
    # cf emitted directly in bf16 (halves HBM writeback + readback).
    cf = conv3x3(x_nhwc.astype(conv_dtype), conv_w_packed.astype(conv_dtype),
                 conv_b, out_dtype=jnp.bfloat16,
                 vmem_limit=vmem_limit)                              # (B,HW,2D)

    inp_flat = x_nhwc.reshape(B, H * W, Cin)
    if Cpad != Cin:
        inp_flat = jnp.pad(inp_flat, ((0, 0), (0, 0), (0, Cpad - Cin)))
    inp_flat = inp_flat.astype(jnp.bfloat16)

    imnet_w = params['imnet_w'].astype(jnp.float32)
    imnet_b = params['imnet_b'].astype(jnp.float32)
    if Cpad != Cout:
        imnet_w = jnp.pad(imnet_w, ((0, 0), (0, Cpad - Cout)))
        imnet_b = jnp.pad(imnet_b, ((0, Cpad - Cout),))
    imnet_b2 = imnet_b.reshape(1, Cpad)

    # Query tiling: pad Q to a multiple of TQ and grid over (B, Q-tiles); the
    # (HW, *) buffers use constant index maps along the Q axis so they stay
    # VMEM-resident across tiles.
    TQ = min(tq_max, ((Q + 7) // 8) * 8)
    Qp = ((Q + TQ - 1) // TQ) * TQ
    coord_p = coord.astype(jnp.float32)
    cell_p = cell.astype(jnp.float32)
    if Qp != Q:
        pad = ((0, 0), (0, Qp - Q), (0, 0))
        coord_p = jnp.pad(coord_p, pad)
        cell_p = jnp.pad(cell_p, pad)

    out = pl.pallas_call(
        functools.partial(_query_kernel, H=H, W=W, D=D),
        out_shape=jax.ShapeDtypeStruct((B, Qp, Cpad), jnp.float32),
        grid=(B, Qp // TQ),
        in_specs=[
            pl.BlockSpec((1, H * W, 2 * D), lambda b, q: (b, 0, 0)),
            pl.BlockSpec((1, H * W, Cpad), lambda b, q: (b, 0, 0)),
            pl.BlockSpec((1, TQ, 2), lambda b, q: (b, q, 0)),
            pl.BlockSpec((1, TQ, 2), lambda b, q: (b, q, 0)),
            pl.BlockSpec((2, Dh), lambda b, q: (0, 0)),
            pl.BlockSpec((D, Cpad), lambda b, q: (0, 0)),
            pl.BlockSpec((1, Cpad), lambda b, q: (0, 0)),
        ],
        out_specs=pl.BlockSpec((1, TQ, Cpad), lambda b, q: (b, q, 0)),
        compiler_params=pltpu.CompilerParams(
            dimension_semantics=("parallel", "parallel"),
            vmem_limit_bytes=vmem_limit),
    )(cf, inp_flat, coord_p, cell_p,
      params['phase_w'].astype(jnp.float32),
      imnet_w, imnet_b2)

    return out[:, :Q, :Cout]


if __name__ == "__main__":
    key = jax.random.PRNGKey(0)
    B, Cin, H, W = 2, 96, 8, 8        # 96 in-channels fixed by Conv2d(96, ...)
    D = 256                           # hidden_dim (module default) -> Dh = 128
    Q = 16                            # number of query points
    Cout = Cin                        # imnet output must match inp channels

    ks = jax.random.split(key, 10)
    params = {
        'coef_w': jax.random.normal(ks[0], (9, Cin, D), jnp.float32) * 0.05,
        'coef_b': jax.random.normal(ks[1], (D,), jnp.float32) * 0.05,
        'freq_w': jax.random.normal(ks[2], (9, Cin, D), jnp.float32) * 0.05,
        'freq_b': jax.random.normal(ks[3], (D,), jnp.float32) * 0.05,
        'phase_w': jax.random.normal(ks[4], (2, D // 2), jnp.float32) * 0.05,
        'imnet_w': jax.random.normal(ks[5], (D, Cout), jnp.float32) * 0.05,
        'imnet_b': jax.random.normal(ks[6], (Cout,), jnp.float32) * 0.05,
    }
    inp = jax.random.normal(ks[7], (B, Cin, H, W), jnp.float32)
    coord = jax.random.uniform(ks[8], (B, Q, 2), jnp.float32, -1.0, 1.0)
    cell = jnp.full((B, Q, 2), 2.0 / (H * 2), jnp.float32)   # 2x-upscale cell

    out = lte_forward(inp, coord, cell, params, use_bf16_conv=False)
    jax.block_until_ready(out)
    assert out.shape == (B, Q, Cout)
    assert bool(jnp.all(jnp.isfinite(out)))
    print("KERNEL_OK")
</pallas_src>

<mosaic_0001>
module attributes {stable_mosaic.version = 11 : i64} {
  func.func @_conv3x3_kernel(%arg0: i32, %arg1: memref<1x10x10x96xf32, #tpu.memory_space<vmem>>, %arg2: memref<864x512xf32, #tpu.memory_space<vmem>>, %arg3: memref<1x512xf32, #tpu.memory_space<vmem>>, %arg4: memref<1x64x512xbf16, #tpu.memory_space<vmem>>) attributes {dimension_semantics = [#tpu.dimension_semantics<parallel>], iteration_bounds = array<i64: 2>, scalar_prefetch = 0 : i64, scratch_operands = 0 : i64, tpu.core_type = #tpu.core_type<tc>, window_params = [{transform_indices = @transform_0, window_bounds = array<i64: 1, 10, 10, 96>}, {pipeline_mode = #tpu.pipeline_mode<synchronous>, transform_indices = @transform_1, window_bounds = array<i64: 864, 512>}, {pipeline_mode = #tpu.pipeline_mode<synchronous>, transform_indices = @transform_2, window_bounds = array<i64: 1, 512>}, {transform_indices = @transform_3, window_bounds = array<i64: 1, 64, 512>}]} {
    %c0 = arith.constant 0 : index
    %c0_0 = arith.constant 0 : index
    %c0_1 = arith.constant 0 : index
    %c0_2 = arith.constant 0 : index
    %0 = vector.load %arg1[%c0, %c0_0, %c0_1, %c0_2] : memref<1x10x10x96xf32, #tpu.memory_space<vmem>>, vector<1x10x10x96xf32>
    %1 = vector.shape_cast %0 : vector<1x10x10x96xf32> to vector<10x10x96xf32>
    %2 = vector.extract_strided_slice %1 {offsets = [0, 0, 0], sizes = [8, 8, 96], strides = [1, 1, 1]} : vector<10x10x96xf32> to vector<8x8x96xf32>
    %3 = vector.shape_cast %2 : vector<8x8x96xf32> to vector<64x96xf32>
    %4 = vector.extract_strided_slice %1 {offsets = [0, 1, 0], sizes = [8, 8, 96], strides = [1, 1, 1]} : vector<10x10x96xf32> to vector<8x8x96xf32>
    %5 = vector.shape_cast %4 : vector<8x8x96xf32> to vector<64x96xf32>
    %6 = vector.extract_strided_slice %1 {offsets = [0, 2, 0], sizes = [8, 8, 96], strides = [1, 1, 1]} : vector<10x10x96xf32> to vector<8x8x96xf32>
    %7 = vector.shape_cast %6 : vector<8x8x96xf32> to vector<64x96xf32>
    %8 = vector.extract_strided_slice %1 {offsets = [1, 0, 0], sizes = [8, 8, 96], strides = [1, 1, 1]} : vector<10x10x96xf32> to vector<8x8x96xf32>
    %9 = vector.shape_cast %8 : vector<8x8x96xf32> to vector<64x96xf32>
    %10 = vector.extract_strided_slice %1 {offsets = [1, 1, 0], sizes = [8, 8, 96], strides = [1, 1, 1]} : vector<10x10x96xf32> to vector<8x8x96xf32>
    %11 = vector.shape_cast %10 : vector<8x8x96xf32> to vector<64x96xf32>
    %12 = vector.extract_strided_slice %1 {offsets = [1, 2, 0], sizes = [8, 8, 96], strides = [1, 1, 1]} : vector<10x10x96xf32> to vector<8x8x96xf32>
    %13 = vector.shape_cast %12 : vector<8x8x96xf32> to vector<64x96xf32>
    %14 = vector.extract_strided_slice %1 {offsets = [2, 0, 0], sizes = [8, 8, 96], strides = [1, 1, 1]} : vector<10x10x96xf32> to vector<8x8x96xf32>
    %15 = vector.shape_cast %14 : vector<8x8x96xf32> to vector<64x96xf32>
    %16 = vector.extract_strided_slice %1 {offsets = [2, 1, 0], sizes = [8, 8, 96], strides = [1, 1, 1]} : vector<10x10x96xf32> to vector<8x8x96xf32>
    %17 = vector.shape_cast %16 : vector<8x8x96xf32> to vector<64x96xf32>
    %18 = vector.extract_strided_slice %1 {offsets = [2, 2, 0], sizes = [8, 8, 96], strides = [1, 1, 1]} : vector<10x10x96xf32> to vector<8x8x96xf32>
    %19 = vector.shape_cast %18 : vector<8x8x96xf32> to vector<64x96xf32>
    %20 = tpu.concatenate %3, %5, %7, %9, %11, %13, %15, %17, %19 in 1 : vector<64x96xf32>, vector<64x96xf32>, vector<64x96xf32>, vector<64x96xf32>, vector<64x96xf32>, vector<64x96xf32>, vector<64x96xf32>, vector<64x96xf32>, vector<64x96xf32> -> vector<64x864xf32>
    %c0_3 = arith.constant 0 : index
    %c0_4 = arith.constant 0 : index
    %21 = vector.load %arg2[%c0_3, %c0_4] : memref<864x512xf32, #tpu.memory_space<vmem>>, vector<864x512xf32>
    %cst = arith.constant dense<0.000000e+00> : vector<64x512xf32>
    %22 = tpu.matmul %20, %21, %cst {dimension_numbers = #tpu.dot_dimension_numbers<[1], [0], [0], [1], [0, 0, 1, 1], [], []>} : vector<64x864xf32>, vector<864x512xf32>, vector<64x512xf32> -> vector<64x512xf32>
    %c0_5 = arith.constant 0 : index
    %c0_6 = arith.constant 0 : index
    %23 = vector.load %arg3[%c0_5, %c0_6] : memref<1x512xf32, #tpu.memory_space<vmem>>, vector<1x512xf32>
    %24 = vector.broadcast %23 : vector<1x512xf32> to vector<64x512xf32>
    %25 = arith.addf %22, %24 : vector<64x512xf32>
    %26 = arith.truncf %25 : vector<64x512xf32> to vector<64x512xbf16>
    %c0_7 = arith.constant 0 : index
    %c0_8 = arith.constant 0 : index
    %c0_9 = arith.constant 0 : index
    %27 = vector.load %arg4[%c0_7, %c0_8, %c0_9] : memref<1x64x512xbf16, #tpu.memory_space<vmem>>, vector<1x64x512xbf16>
    %28 = vector.shape_cast %27 : vector<1x64x512xbf16> to vector<64x512xbf16>
    %29 = vector.shape_cast %26 : vector<64x512xbf16> to vector<1x64x512xbf16>
    tpu.vector_store %arg4[%c0_7, %c0_8, %c0_9], %29 {strides = array<i32>} : memref<1x64x512xbf16, #tpu.memory_space<vmem>>, vector<1x64x512xbf16>,
    return
  }
  func.func @transform_0(%arg0: i32) -> (i32, i32, i32, i32) {
    %c0_i32 = arith.constant 0 : i32
    %c0_i32_0 = arith.constant 0 : i32
    %c0_i32_1 = arith.constant 0 : i32
    %c0_i32_2 = arith.constant 0 : i32
    return %arg0, %c0_i32, %c0_i32_0, %c0_i32_1 : i32, i32, i32, i32
  }
  func.func @transform_1(%arg0: i32) -> (i32, i32) {
    %c0_i32 = arith.constant 0 : i32
    %c0_i32_0 = arith.constant 0 : i32
    %c0_i32_1 = arith.constant 0 : i32
    return %c0_i32, %c0_i32_0 : i32, i32
  }
  func.func @transform_2(%arg0: i32) -> (i32, i32) {
    %c0_i32 = arith.constant 0 : i32
    %c0_i32_0 = arith.constant 0 : i32
    %c0_i32_1 = arith.constant 0 : i32
    return %c0_i32, %c0_i32_0 : i32, i32
  }
  func.func @transform_3(%arg0: i32) -> (i32, i32, i32) {
    %c0_i32 = arith.constant 0 : i32
    %c0_i32_0 = arith.constant 0 : i32
    %c0_i32_1 = arith.constant 0 : i32
    return %arg0, %c0_i32, %c0_i32_0 : i32, i32, i32
  }
}

</mosaic_0001>

<llo_original>
// kernel: tpu_custom_call.1
$region0: #{tpu_custom_call.1}
  #allocation0 [shape = 'u32[]', space=smem, size = 0x4, offset = 0x4, fixed_abs, tag = 'smem constant byte address 0x4 - core index']
  #allocation1 [shape = 'u32[72,128]{1,0:T(1,128)}', space=vmem, size = 0x9000, scoped, tag = 'internal scratch']
  %s0 = inlined_call_operand.vmem [shape: f32[2,10,10,96], index: 0, kind: input, shape index: {}]
  %s1 = inlined_call_operand.hbm [shape: f32[864,512], index: 1, kind: input, shape index: {}]
  %s2 = inlined_call_operand.hbm [shape: f32[1,512], index: 2, kind: input, shape index: {}]
  %s3 = inlined_call_operand.hbm [shape: bf16[2,64,512], index: 3, kind: output, shape index: {}]
  %s4 = sld [smem:[#allocation0]]
  $region53: #{tpu_custom_call.1} parent=0
    _
  %s6 = ssub.s32 1, %s4
  %s7 = scalar_select 0, %s6, %s4
  $region1: #{tpu_custom_call.1} parent=0
    #allocation2 [shape = 'u8[1769472]{0}', space=vmem, size = 0x1b0000, scoped, tag = 'input window, operand 1, single buffered']
    #allocation3 [shape = 's32[2]{0}', space=sflag, size = 0x8, scoped, tag = 'scoped memory for tpu_custom_call.1']
    #allocation4 [shape = 's32[2]{0}', space=sflag, size = 0x8, scoped, tag = 'scoped memory for tpu_custom_call.1']
    #allocation5 [shape = 'u8[2048]{0}', space=vmem, size = 0x800, scoped, tag = 'input window, operand 2, single buffered']
    #allocation6 [shape = 's32[1]{0}', space=sflag, size = 0x4, scoped, tag = 'scoped memory for tpu_custom_call.1']
    #allocation7 [shape = 'u8[131072]{0}', space=vmem, size = 0x20000, scoped, tag = 'output window, operand 0']
    %8 = vsyncpa [#allocation3], 0
    %9 = vsyncpa [#allocation6], 0
    %10 = vsyncpa [#allocation4], 0
    %s11 = scalar_lea.sflag [#allocation4], 1
    %12 = vsyncpa %s11, 0
    loop: start=0, step=1, limit=4
    $region2: #{tpu_custom_call.1} parent=1 // loop_pre_header
      _
    $region3: #{tpu_custom_call.1} parent=1 // loop_header
      %s14 = sphi 0, %s18
      %p15 = scmp.ge.s32.totalorder %s14, 4
      %s24 = sphi 0, %s26
      %s27 = sphi 0, %s24
      %s28 = sphi 0, %s27
      %s44 = sphi 0, %s28
      %s48 = sphi 0, %s48
      %s50 = sphi 0, %s48
      %s51 = sphi 0, %s50
      %s65 = sphi 0, %s51
      %s69 = sphi 0, %s69
      %s71 = sphi 0, %s69
      %s72 = sphi 0, %s71
      %s86 = sphi 0, %s72
      %s92 = sphi 0, %s94
      %s95 = sphi 0, %s92
      %s96 = sphi 0, %s95
      %s112 = sphi 0, %s96
    $region4: #{tpu_custom_call.1} parent=1 // loop_header_branch
      %17 = sbr.rel (%p15) target = $region8
    $region5: #{tpu_custom_call.1} parent=1 // loop_body
      %s19 = ssub.s32 %s14, 1
      %s20 = ssub.s32 %s14, 2
      %s21 = sadd.s32 %s14, 1
      %s22 = ssub.s32 %s14, %s21
      %p23 = scmp.eq.s32.totalorder %s22, 0
      %s25 = sadd.s32 %s24, 1
      %s26 = scalar_select %p23, %s24, %s25
      %p29 = pneg %p23
      %p30 = scmp.eq.s32.totalorder %s14, 1
      %p31 = por %p29, %p30
      %p32 = scmp.ne.s32.totalorder %s24, %s27
      %p33 = scmp.eq.s32.totalorder %s14, 0
      %p34 = por %p32, %p33
      %p35 = scmp.ne.s32.totalorder %s24, %s27
      %p36 = scmp.eq.s32.totalorder %s19, 1
      %p37 = por %p35, %p36
      %p38 = scmp.ne.s32.totalorder %s27, %s28
      %p39 = scmp.eq.s32.totalorder %s19, 0
      %p40 = por %p38, %p39
      %p41 = scmp.ne.s32.totalorder %s27, %s28
      %p42 = scmp.eq.s32.totalorder %s20, 1
      %p43 = por %p41, %p42
      %p45 = scmp.ne.s32.totalorder %s28, %s44
      %p46 = scmp.eq.s32.totalorder %s20, 0
      %p47 = por %p45, %p46
      %s49 = sadd.s32 %s48, 1
      %p52 = scmp.eq.s32.totalorder %s14, 1
      %p53 = scmp.ne.s32.totalorder %s48, %s50
      %p54 = scmp.eq.s32.totalorder %s14, 0
      %p55 = por %p53, %p54
      %p56 = scmp.ne.s32.totalorder %s48, %s50
      %p57 = scmp.eq.s32.totalorder %s19, 1
      %p58 = por %p56, %p57
      %p59 = scmp.ne.s32.totalorder %s50, %s51
      %p60 = scmp.eq.s32.totalorder %s19, 0
      %p61 = por %p59, %p60
      %p62 = scmp.ne.s32.totalorder %s50, %s51
      %p63 = scmp.eq.s32.totalorder %s20, 1
      %p64 = por %p62, %p63
      %p66 = scmp.ne.s32.totalorder %s51, %s65
      %p67 = scmp.eq.s32.totalorder %s20, 0
      %p68 = por %p66, %p67
      %s70 = sadd.s32 %s69, 1
      %p73 = scmp.eq.s32.totalorder %s14, 1
      %p74 = scmp.ne.s32.totalorder %s69, %s71
      %p75 = scmp.eq.s32.totalorder %s14, 0
      %p76 = por %p74, %p75
      %p77 = scmp.ne.s32.totalorder %s69, %s71
      %p78 = scmp.eq.s32.totalorder %s19, 1
      %p79 = por %p77, %p78
      %p80 = scmp.ne.s32.totalorder %s71, %s72
      %p81 = scmp.eq.s32.totalorder %s19, 0
      %p82 = por %p80, %p81
      %p83 = scmp.ne.s32.totalorder %s71, %s72
      %p84 = scmp.eq.s32.totalorder %s20, 1
      %p85 = por %p83, %p84
      %p87 = scmp.ne.s32.totalorder %s72, %s86
      %p88 = scmp.eq.s32.totalorder %s20, 0
      %p89 = por %p87, %p88
      %s90 = ssub.s32 %s14, %s21
      %p91 = scmp.eq.s32.totalorder %s90, 0
      %s93 = sadd.s32 %s92, 1
      %s94 = scalar_select %p91, %s92, %s93
      %p97 = pneg %p91
      %p98 = scmp.eq.s32.totalorder %s14, 1
      %p99 = por %p97, %p98
      %p100 = scmp.ne.s32.totalorder %s92, %s95
      %p101 = scmp.eq.s32.totalorder %s14, 0
      %p102 = por %p100, %p101
      %p103 = scmp.ne.s32.totalorder %s92, %s95
      %p104 = scmp.eq.s32.totalorder %s19, 1
      %p105 = por %p103, %p104
      %p106 = scmp.ne.s32.totalorder %s95, %s96
      %p107 = scmp.eq.s32.totalorder %s19, 0
      %p108 = por %p106, %p107
      %p109 = scmp.ne.s32.totalorder %s95, %s96
      %p110 = scmp.eq.s32.totalorder %s20, 1
      %p111 = por %p109, %p110
      %p113 = scmp.ne.s32.totalorder %s96, %s112
      %p114 = scmp.eq.s32.totalorder %s20, 0
      %p115 = por %p113, %p114
      %p116 = scmp.le.s32.totalorder 1, %s14
      %p117 = scmp.lt.s32.totalorder %s14, 3
      %p118 = pnand %p116, %p117
      %p119 = pneg %p118
      // Predicated region
      $region9: #{tpu_custom_call.1} parent=5 // pred_check
        _
      $region10: #{tpu_custom_call.1} parent=5 // pred_check_branch
        %121 = sbr.rel (%p118) target = $region12
      $region11: #{tpu_custom_call.1} parent=5 // pred_region
        %s122 = ssub.s32 %s14, 1
        // Predicated region
        $region13: #{tpu_custom_call.1} parent=11 // pred_check
          %p123 = pneg %p61
        $region14: #{tpu_custom_call.1} parent=11 // pred_check_branch
          %125 = sbr.rel (%p123) target = $region16
        $region15: #{tpu_custom_call.1} parent=11 // pred_region
          %127 = vsyncadd [#allocation3], 0
          %s128 = sshll.u32 %s1, 4
          %s129 = int_to_ptr.hbm [resolvable:$true] %s128
          %s130 = sshll.u32 [#allocation2], 4
          %s131 = int_to_ptr.vmem [resolvable:$true] %s130
          %136 = dma.hbm_to_vmem [thread:$0]  %s129, 55296, %s131, [#allocation3], 512, 512, 32
        $region16: #{tpu_custom_call.1} parent=11 // pred_fallthru
          _
        // Predicated region
        $region17: #{tpu_custom_call.1} parent=11 // pred_check
          %p137 = pneg %p82
        $region18: #{tpu_custom_call.1} parent=11 // pred_check_branch
          %139 = sbr.rel (%p137) target = $region20
        $region19: #{tpu_custom_call.1} parent=11 // pred_region
          %141 = vsyncadd [#allocation6], 0
          %s143 = sshll.u32 %s2, 4
          %s144 = int_to_ptr.hbm [resolvable:$true] %s143
          %s145 = sshll.u32 [#allocation5], 4
          %s146 = int_to_ptr.vmem [resolvable:$true] %s145
          %148 = dma.hbm_to_vmem [thread:$0]  %s144, 64, %s146, [#allocation6]
        $region20: #{tpu_custom_call.1} parent=11 // pred_fallthru
          _
      $region12: #{tpu_custom_call.1} parent=5 // pred_fallthru
        _
      %p149 = scmp.lt.s32.totalorder %s14, 2
      // Predicated region
      $region21: #{tpu_custom_call.1} parent=5 // pred_check
        %p150 = pneg %p149
      $region22: #{tpu_custom_call.1} parent=5 // pred_check_branch
        %152 = sbr.rel (%p150) target = $region24
      $region23: #{tpu_custom_call.1} parent=5 // pred_region
        // Predicated region
        $region25: #{tpu_custom_call.1} parent=23 // pred_check
          %p153 = pneg %p34
        $region26: #{tpu_custom_call.1} parent=23 // pred_check_branch
          %155 = sbr.rel (%p153) target = $region28
        $region27: #{tpu_custom_call.1} parent=23 // pred_region
          %p156 = scmp.lt.s32.totalorder %s14, 1
          %s157 = scalar_select %p156, %s14, 1
          %s158 = smul.addr %s157, 20
          %s159 = smul.addr %s158, 8
          %s160 = scalar_lea.vmem %s0, %s159
        $region28: #{tpu_custom_call.1} parent=23 // pred_fallthru
          _
      $region24: #{tpu_custom_call.1} parent=5 // pred_fallthru
        _
      %p161 = scmp.le.s32.totalorder 1, %s14
      %p162 = scmp.lt.s32.totalorder %s14, 3
      %p163 = pnand %p161, %p162
      %p164 = pneg %p163
      // Predicated region
      $region29: #{tpu_custom_call.1} parent=5 // pred_check
        _
      $region30: #{tpu_custom_call.1} parent=5 // pred_check_branch
        %166 = sbr.rel (%p163) target = $region32
      $region31: #{tpu_custom_call.1} parent=5 // pred_region
        %s167 = ssub.s32 %s14, 1
        // Predicated region
        $region33: #{tpu_custom_call.1} parent=31 // pred_check
          %p168 = pneg %p61
        $region34: #{tpu_custom_call.1} parent=31 // pred_check_branch
          %170 = sbr.rel (%p168) target = $region36
        $region35: #{tpu_custom_call.1} parent=31 // pred_region
          %172 = dma.done [#allocation3], 55296
        $region36: #{tpu_custom_call.1} parent=31 // pred_fallthru
          _
        // Predicated region
        $region37: #{tpu_custom_call.1} parent=31 // pred_check
          %p173 = pneg %p82
        $region38: #{tpu_custom_call.1} parent=31 // pred_check_branch
          %175 = sbr.rel (%p173) target = $region40
        $region39: #{tpu_custom_call.1} parent=31 // pred_region
          %177 = dma.done [#allocation6], 64
        $region40: #{tpu_custom_call.1} parent=31 // pred_fallthru
          _
        %p178 = scmp.lt.s32.totalorder %s19, 1
        %s179 = scalar_select %p178, %s19, 1
        %s180 = smul.addr %s179, 20
        %s181 = smul.addr %s180, 8
        %s182 = scalar_lea.vmem %s0, %s181
        %p183 = pneg %p40
        %p184 = pneg %p37
        %p185 = pneg %p61
        %p186 = pneg %p58
        %p187 = pneg %p82
        %p188 = pneg %p79
        %p189 = pneg %p108
        %p190 = pneg %p105
        %s191 = sand.u32 %s95, 1
        %s192 = scalar_lea.sflag [#allocation4], %s191
        %s193 = sand.u32 %s95, 1
        %s194 = smul.addr %s193, 128
        %s195 = scalar_lea.vmem [#allocation7], %s194
        %p196 = scmp.lt.s32.totalorder %s19, 1
        %s197 = scalar_select %p196, %s19, 1
        %s198 = smul.addr %s197, 20
        %s199 = smul.addr %s198, 8
        %s200 = scalar_lea.vmem %s0, %s199
        %v201 = vld [vmem:[%s200] sm:$0xff]
        %v202 = vld [vmem:[%s200 + $0x8] sm:$0x3]
        %v203 = vld [vmem:[%s200 + $0x10] sm:$0xff]
        %v204 = vld [vmem:[%s200 + $0x18] sm:$0x3]
        %v205 = vld [vmem:[%s200 + $0x20] sm:$0xff]
        %v206 = vld [vmem:[%s200 + $0x28] sm:$0x3]
        %v207 = vld [vmem:[%s200 + $0x30] sm:$0xff]
        %v208 = vld [vmem:[%s200 + $0x38] sm:$0x3]
        %v209 = vld [vmem:[%s200 + $0x40] sm:$0xff]
        %v210 = vld [vmem:[%s200 + $0x48] sm:$0x3]
        %v211 = vld [vmem:[%s200 + $0x50] sm:$0xff]
        %v212 = vld [vmem:[%s200 + $0x58] sm:$0x3]
        %v213 = vld [vmem:[%s200 + $0x60] sm:$0xff]
        %v214 = vld [vmem:[%s200 + $0x68] sm:$0x3]
        %v215 = vld [vmem:[%s200 + $0x70] sm:$0xff]
        %v216 = vld [vmem:[%s200 + $0x78] sm:$0x3]
        %v217 = vld [vmem:[%s200 + $0x80] sm:$0xff]
        %v218 = vld [vmem:[%s200 + $0x88] sm:$0x3]
        %v219 = vld [vmem:[%s200 + $0x90] sm:$0xff]
        %v220 = vld [vmem:[%s200 + $0x98] sm:$0x3]
        %vm237 = vcmask 1046528
        %v238 = vrot.slane %v201, 1
        %v239 = vrot.slane %v202, 1
        %v240 = vsel %vm237, %v238, %v239
        %v241 = vrot.slane %v203, 1
        %v242 = vrot.slane %v204, 1
        %v243 = vsel %vm237, %v241, %v242
        %v244 = vrot.slane %v205, 1
        %v245 = vrot.slane %v206, 1
        %v246 = vsel %vm237, %v244, %v245
        %v247 = vrot.slane %v207, 1
        %v248 = vrot.slane %v208, 1
        %v249 = vsel %vm237, %v247, %v248
        %v250 = vrot.slane %v209, 1
        %v251 = vrot.slane %v210, 1
        %v252 = vsel %vm237, %v250, %v251
        %v253 = vrot.slane %v211, 1
        %v254 = vrot.slane %v212, 1
        %v255 = vsel %vm237, %v253, %v254
        %v256 = vrot.slane %v213, 1
        %v257 = vrot.slane %v214, 1
        %v258 = vsel %vm237, %v256, %v257
        %v259 = vrot.slane %v215, 1
        %v260 = vrot.slane %v216, 1
        %v261 = vsel %vm237, %v259, %v260
        %vm262 = vcmask 1045504
        %v263 = vrot.slane %v201, 2
        %v264 = vrot.slane %v202, 2
        %v265 = vsel %vm262, %v263, %v264
        %v266 = vrot.slane %v203, 2
        %v267 = vrot.slane %v204, 2
        %v268 = vsel %vm262, %v266, %v267
        %v269 = vrot.slane %v205, 2
        %v270 = vrot.slane %v206, 2
        %v271 = vsel %vm262, %v269, %v270
        %v272 = vrot.slane %v207, 2
        %v273 = vrot.slane %v208, 2
        %v274 = vsel %vm262, %v272, %v273
        %v275 = vrot.slane %v209, 2
        %v276 = vrot.slane %v210, 2
        %v277 = vsel %vm262, %v275, %v276
        %v278 = vrot.slane %v211, 2
        %v279 = vrot.slane %v212, 2
        %v280 = vsel %vm262, %v278, %v279
        %v281 = vrot.slane %v213, 2
        %v282 = vrot.slane %v214, 2
        %v283 = vsel %vm262, %v281, %v282
        %v284 = vrot.slane %v215, 2
        %v285 = vrot.slane %v216, 2
        %v286 = vsel %vm262, %v284, %v285
        %v289 = vrot.slane %v217, 1
        %v290 = vrot.slane %v218, 1
        %v291 = vsel %vm237, %v289, %v290
        %v300 = vrot.slane %v217, 2
        %v301 = vrot.slane %v218, 2
        %v302 = vsel %vm262, %v300, %v301
        %v305 = vrot.slane %v219, 1
        %v306 = vrot.slane %v220, 1
        %v307 = vsel %vm237, %v305, %v306
        %v308 = vrot.slane %v219, 2
        %v309 = vrot.slane %v220, 2
        %v310 = vsel %vm262, %v308, %v309
        %311 = vrot.lane.b32.xlu0 %v240, 96
        %v312 = vpop.permute.xlu0 %311
        %313 = vrot.lane.b32.xlu0 %v243, 96
        %v314 = vpop.permute.xlu0 %313
        %315 = vrot.lane.b32.xlu0 %v246, 96
        %v316 = vpop.permute.xlu0 %315
        %317 = vrot.lane.b32.xlu0 %v249, 96
        %v318 = vpop.permute.xlu0 %317
        %319 = vrot.lane.b32.xlu0 %v252, 96
        %v320 = vpop.permute.xlu0 %319
        %321 = vrot.lane.b32.xlu0 %v255, 96
        %v322 = vpop.permute.xlu0 %321
        %323 = vrot.lane.b32.xlu0 %v258, 96
        %v324 = vpop.permute.xlu0 %323
        %325 = vrot.lane.b32.xlu0 %v261, 96
        %v326 = vpop.permute.xlu0 %325
        %335 = vrot.lane.b32.xlu0 %v265, 64
        %v336 = vpop.permute.xlu0 %335
        %337 = vrot.lane.b32.xlu0 %v268, 64
        %v338 = vpop.permute.xlu0 %337
        %339 = vrot.lane.b32.xlu0 %v271, 64
        %v340 = vpop.permute.xlu0 %339
        %341 = vrot.lane.b32.xlu0 %v274, 64
        %v342 = vpop.permute.xlu0 %341
        %343 = vrot.lane.b32.xlu0 %v277, 64
        %v344 = vpop.permute.xlu0 %343
        %345 = vrot.lane.b32.xlu0 %v280, 64
        %v346 = vpop.permute.xlu0 %345
        %347 = vrot.lane.b32.xlu0 %v283, 64
        %v348 = vpop.permute.xlu0 %347
        %349 = vrot.lane.b32.xlu0 %v286, 64
        %v350 = vpop.permute.xlu0 %349
        %359 = vrot.lane.b32.xlu0 %v203, 32
        %v360 = vpop.permute.xlu0 %359
        %361 = vrot.lane.b32.xlu0 %v205, 32
        %v362 = vpop.permute.xlu0 %361
        %363 = vrot.lane.b32.xlu0 %v207, 32
        %v364 = vpop.permute.xlu0 %363
        %365 = vrot.lane.b32.xlu0 %v209, 32
        %v366 = vpop.permute.xlu0 %365
        %367 = vrot.lane.b32.xlu0 %v211, 32
        %v368 = vpop.permute.xlu0 %367
        %369 = vrot.lane.b32.xlu0 %v213, 32
        %v370 = vpop.permute.xlu0 %369
        %371 = vrot.lane.b32.xlu0 %v215, 32
        %v372 = vpop.permute.xlu0 %371
        %373 = vrot.lane.b32.xlu0 %v217, 32
        %v374 = vpop.permute.xlu0 %373
        %383 = vrot.lane.b32.xlu0 %v268, 96
        %v384 = vpop.permute.xlu0 %383
        %385 = vrot.lane.b32.xlu0 %v271, 96
        %v386 = vpop.permute.xlu0 %385
        %387 = vrot.lane.b32.xlu0 %v274, 96
        %v388 = vpop.permute.xlu0 %387
        %389 = vrot.lane.b32.xlu0 %v277, 96
        %v390 = vpop.permute.xlu0 %389
        %391 = vrot.lane.b32.xlu0 %v280, 96
        %v392 = vpop.permute.xlu0 %391
        %393 = vrot.lane.b32.xlu0 %v283, 96
        %v394 = vpop.permute.xlu0 %393
        %395 = vrot.lane.b32.xlu0 %v286, 96
        %v396 = vpop.permute.xlu0 %395
        %397 = vrot.lane.b32.xlu0 %v302, 96
        %v398 = vpop.permute.xlu0 %397
        %407 = vrot.lane.b32.xlu0 %v205, 64
        %v408 = vpop.permute.xlu0 %407
        %409 = vrot.lane.b32.xlu0 %v207, 64
        %v410 = vpop.permute.xlu0 %409
        %411 = vrot.lane.b32.xlu0 %v209, 64
        %v412 = vpop.permute.xlu0 %411
        %413 = vrot.lane.b32.xlu0 %v211, 64
        %v414 = vpop.permute.xlu0 %413
        %415 = vrot.lane.b32.xlu0 %v213, 64
        %v416 = vpop.permute.xlu0 %415
        %417 = vrot.lane.b32.xlu0 %v215, 64
        %v418 = vpop.permute.xlu0 %417
        %419 = vrot.lane.b32.xlu0 %v217, 64
        %v420 = vpop.permute.xlu0 %419
        %421 = vrot.lane.b32.xlu0 %v219, 64
        %v422 = vpop.permute.xlu0 %421
        %431 = vrot.lane.b32.xlu0 %v246, 32
        %v432 = vpop.permute.xlu0 %431
        %433 = vrot.lane.b32.xlu0 %v249, 32
        %v434 = vpop.permute.xlu0 %433
        %435 = vrot.lane.b32.xlu0 %v252, 32
        %v436 = vpop.permute.xlu0 %435
        %437 = vrot.lane.b32.xlu0 %v255, 32
        %v438 = vpop.permute.xlu0 %437
        %439 = vrot.lane.b32.xlu0 %v258, 32
        %v440 = vpop.permute.xlu0 %439
        %441 = vrot.lane.b32.xlu0 %v261, 32
        %v442 = vpop.permute.xlu0 %441
        %443 = vrot.lane.b32.xlu0 %v291, 32
        %v444 = vpop.permute.xlu0 %443
        %445 = vrot.lane.b32.xlu0 %v307, 32
        %v446 = vpop.permute.xlu0 %445
        %vm455 = vcmask 785408
        %v456 = vsel %vm455, %v201, %v312
        %v457 = vsel %vm455, %v203, %v314
        %v458 = vsel %vm455, %v205, %v316
        %v459 = vsel %vm455, %v207, %v318
        %v460 = vsel %vm455, %v209, %v320
        %v461 = vsel %vm455, %v211, %v322
        %v462 = vsel %vm455, %v213, %v324
        %v463 = vsel %vm455, %v215, %v326
        %vm464 = vcmask 523264
        %v465 = vsel %vm464, %v312, %v336
        %v466 = vsel %vm464, %v314, %v338
        %v467 = vsel %vm464, %v316, %v340
        %v468 = vsel %vm464, %v318, %v342
        %v469 = vsel %vm464, %v320, %v344
        %v470 = vsel %vm464, %v322, %v346
        %v471 = vsel %vm464, %v324, %v348
        %v472 = vsel %vm464, %v326, %v350
        %vm473 = vcmask 261120
        %v474 = vsel %vm473, %v336, %v360
        %v475 = vsel %vm473, %v338, %v362
        %v476 = vsel %vm473, %v340, %v364
        %v477 = vsel %vm473, %v342, %v366
        %v478 = vsel %vm473, %v344, %v368
        %v479 = vsel %vm473, %v346, %v370
        %v480 = vsel %vm473, %v348, %v372
        %v481 = vsel %vm473, %v350, %v374
        %v482 = vsel %vm455, %v243, %v384
        %v483 = vsel %vm455, %v246, %v386
        %v484 = vsel %vm455, %v249, %v388
        %v485 = vsel %vm455, %v252, %v390
        %v486 = vsel %vm455, %v255, %v392
        %v487 = vsel %vm455, %v258, %v394
        %v488 = vsel %vm455, %v261, %v396
        %v489 = vsel %vm455, %v291, %v398
        %v490 = vsel %vm464, %v384, %v408
        %v491 = vsel %vm464, %v386, %v410
        %v492 = vsel %vm464, %v388, %v412
        %v493 = vsel %vm464, %v390, %v414
        %v494 = vsel %vm464, %v392, %v416
        %v495 = vsel %vm464, %v394, %v418
        %v496 = vsel %vm464, %v396, %v420
        %v497 = vsel %vm464, %v398, %v422
        %v498 = vsel %vm473, %v408, %v432
        %v499 = vsel %vm473, %v410, %v434
        %v500 = vsel %vm473, %v412, %v436
        %v501 = vsel %vm473, %v414, %v438
        %v502 = vsel %vm473, %v416, %v440
        %v503 = vsel %vm473, %v418, %v442
        %v504 = vsel %vm473, %v420, %v444
        %v505 = vsel %vm473, %v422, %v446
        %v506 = vld [vmem:[#allocation2] sm:$0xff]
        %v507 = vld [vmem:[#allocation2 + $0x8] sm:$0xff]
        %v508 = vld [vmem:[#allocation2 + $0x10] sm:$0xff]
        %v509 = vld [vmem:[#allocation2 + $0x18] sm:$0xff]
        %v510 = vld [vmem:[#allocation2 + $0x20] sm:$0xff]
        %v511 = vld [vmem:[#allocation2 + $0x28] sm:$0xff]
        %v512 = vld [vmem:[#allocation2 + $0x30] sm:$0xff]
        %v513 = vld [vmem:[#allocation2 + $0x38] sm:$0xff]
        %v514 = vld [vmem:[#allocation2 + $0x40] sm:$0xff]
        %v515 = vld [vmem:[#allocation2 + $0x48] sm:$0xff]
        %v516 = vld [vmem:[#allocation2 + $0x50] sm:$0xff]
        %v517 = vld [vmem:[#allocation2 + $0x58] sm:$0xff]
        %v518 = vld [vmem:[#allocation2 + $0x60] sm:$0xff]
        %v519 = vld [vmem:[#allocation2 + $0x68] sm:$0xff]
        %v520 = vld [vmem:[#allocation2 + $0x70] sm:$0xff]
        %v521 = vld [vmem:[#allocation2 + $0x78] sm:$0xff]
        %v522 = vld [vmem:[#allocation2 + $0x80] sm:$0xff]
        %v523 = vld [vmem:[#allocation2 + $0x88] sm:$0xff]
        %v524 = vld [vmem:[#allocation2 + $0x90] sm:$0xff]
        %v525 = vld [vmem:[#allocation2 + $0x98] sm:$0xff]
        %v526 = vld [vmem:[#allocation2 + $0xa0] sm:$0xff]
        %v527 = vld [vmem:[#allocation2 + $0xa8] sm:$0xff]
        %v528 = vld [vmem:[#allocation2 + $0xb0] sm:$0xff]
        %v529 = vld [vmem:[#allocation2 + $0xb8] sm:$0xff]
        %v530 = vld [vmem:[#allocation2 + $0xc0] sm:$0xff]
        %v531 = vld [vmem:[#allocation2 + $0xc8] sm:$0xff]
        %v532 = vld [vmem:[#allocation2 + $0xd0] sm:$0xff]
        %v533 = vld [vmem:[#allocation2 + $0xd8] sm:$0xff]
        %v534 = vld [vmem:[#allocation2 + $0xe0] sm:$0xff]
        %v535 = vld [vmem:[#allocation2 + $0xe8] sm:$0xff]
        %v536 = vld [vmem:[#allocation2 + $0xf0] sm:$0xff]
        %v537 = vld [vmem:[#allocation2 + $0xf8] sm:$0xff]
        %v538 = vld [vmem:[#allocation2 + $0x100] sm:$0xff]
        %v539 = vld [vmem:[#allocation2 + $0x108] sm:$0xff]
        %v540 = vld [vmem:[#allocation2 + $0x110] sm:$0xff]
        %v541 = vld [vmem:[#allocation2 + $0x118] sm:$0xff]
        %v542 = vld [vmem:[#allocation2 + $0x120] sm:$0xff]
        %v543 = vld [vmem:[#allocation2 + $0x128] sm:$0xff]
        %v544 = vld [vmem:[#allocation2 + $0x130] sm:$0xff]
        %v545 = vld [vmem:[#allocation2 + $0x138] sm:$0xff]
        %v546 = vld [vmem:[#allocation2 + $0x140] sm:$0xff]
        %v547 = vld [vmem:[#allocation2 + $0x148] sm:$0xff]
        %v548 = vld [vmem:[#allocation2 + $0x150] sm:$0xff]
        %v549 = vld [vmem:[#allocation2 + $0x158] sm:$0xff]
        %v550 = vld [vmem:[#allocation2 + $0x160] sm:$0xff]
        %v551 = vld [vmem:[#allocation2 + $0x168] sm:$0xff]
        %v552 = vld [vmem:[#allocation2 + $0x170] sm:$0xff]
        %v553 = vld [vmem:[#allocation2 + $0x178] sm:$0xff]
        %v554 = vld [vmem:[#allocation2 + $0x180] sm:$0xff]
        %v555 = vld [vmem:[#allocation2 + $0x188] sm:$0xff]
        %v556 = vld [vmem:[#allocation2 + $0x190] sm:$0xff]
        %v557 = vld [vmem:[#allocation2 + $0x198] sm:$0xff]
        %v558 = vld [vmem:[#allocation2 + $0x1a0] sm:$0xff]
        %v559 = vld [vmem:[#allocation2 + $0x1a8] sm:$0xff]
        %v560 = vld [vmem:[#allocation2 + $0x1b0] sm:$0xff]
        %v561 = vld [vmem:[#allocation2 + $0x1b8] sm:$0xff]
        %v562 = vld [vmem:[#allocation2 + $0x1c0] sm:$0xff]
        %v563 = vld [vmem:[#allocation2 + $0x1c8] sm:$0xff]
        %v564 = vld [vmem:[#allocation2 + $0x1d0] sm:$0xff]
        %v565 = vld [vmem:[#allocation2 + $0x1d8] sm:$0xff]
        %v566 = vld [vmem:[#allocation2 + $0x1e0] sm:$0xff]
        %v567 = vld [vmem:[#allocation2 + $0x1e8] sm:$0xff]
        %v568 = vld [vmem:[#allocation2 + $0x1f0] sm:$0xff]
        %v569 = vld [vmem:[#allocation2 + $0x1f8] sm:$0xff]
        %v570 = vld [vmem:[#allocation2 + $0x200] sm:$0xff]
        %v571 = vld [vmem:[#allocation2 + $0x208] sm:$0xff]
        %v572 = vld [vmem:[#allocation2 + $0x210] sm:$0xff]
        %v573 = vld [vmem:[#allocation2 + $0x218] sm:$0xff]
        %v574 = vld [vmem:[#allocation2 + $0x220] sm:$0xff]
        %v575 = vld [vmem:[#allocation2 + $0x228] sm:$0xff]
        %v576 = vld [vmem:[#allocation2 + $0x230] sm:$0xff]
        %v577 = vld [vmem:[#allocation2 + $0x238] sm:$0xff]
        %v578 = vld [vmem:[#allocation2 + $0x240] sm:$0xff]
        %v579 = vld [vmem:[#allocation2 + $0x248] sm:$0xff]
        %v580 = vld [vmem:[#allocation2 + $0x250] sm:$0xff]
        %v581 = vld [vmem:[#allocation2 + $0x258] sm:$0xff]
        %v582 = vld [vmem:[#allocation2 + $0x260] sm:$0xff]
        %v583 = vld [vmem:[#allocation2 + $0x268] sm:$0xff]
        %v584 = vld [vmem:[#allocation2 + $0x270] sm:$0xff]
        %v585 = vld [vmem:[#allocation2 + $0x278] sm:$0xff]
        %v586 = vld [vmem:[#allocation2 + $0x280] sm:$0xff]
        %v587 = vld [vmem:[#allocation2 + $0x288] sm:$0xff]
        %v588 = vld [vmem:[#allocation2 + $0x290] sm:$0xff]
        %v589 = vld [vmem:[#allocation2 + $0x298] sm:$0xff]
        %v590 = vld [vmem:[#allocation2 + $0x2a0] sm:$0xff]
        %v591 = vld [vmem:[#allocation2 + $0x2a8] sm:$0xff]
        %v592 = vld [vmem:[#allocation2 + $0x2b0] sm:$0xff]
        %v593 = vld [vmem:[#allocation2 + $0x2b8] sm:$0xff]
        %v594 = vld [vmem:[#allocation2 + $0x2c0] sm:$0xff]
        %v595 = vld [vmem:[#allocation2 + $0x2c8] sm:$0xff]
        %v596 = vld [vmem:[#allocation2 + $0x2d0] sm:$0xff]
        %v597 = vld [vmem:[#allocation2 + $0x2d8] sm:$0xff]
        %v598 = vld [vmem:[#allocation2 + $0x2e0] sm:$0xff]
        %v599 = vld [vmem:[#allocation2 + $0x2e8] sm:$0xff]
        %v600 = vld [vmem:[#allocation2 + $0x2f0] sm:$0xff]
        %v601 = vld [vmem:[#allocation2 + $0x2f8] sm:$0xff]
        %v602 = vld [vmem:[#allocation2 + $0x300] sm:$0xff]
        %v603 = vld [vmem:[#allocation2 + $0x308] sm:$0xff]
        %v604 = vld [vmem:[#allocation2 + $0x310] sm:$0xff]
        %v605 = vld [vmem:[#allocation2 + $0x318] sm:$0xff]
        %v606 = vld [vmem:[#allocation2 + $0x320] sm:$0xff]
        %v607 = vld [vmem:[#allocation2 + $0x328] sm:$0xff]
        %v608 = vld [vmem:[#allocation2 + $0x330] sm:$0xff]
        %v609 = vld [vmem:[#allocation2 + $0x338] sm:$0xff]
        %v610 = vld [vmem:[#allocation2 + $0x340] sm:$0xff]
        %v611 = vld [vmem:[#allocation2 + $0x348] sm:$0xff]
        %v612 = vld [vmem:[#allocation2 + $0x350] sm:$0xff]
        %v613 = vld [vmem:[#allocation2 + $0x358] sm:$0xff]
        %v614 = vld [vmem:[#allocation2 + $0x360] sm:$0xff]
        %v615 = vld [vmem:[#allocation2 + $0x368] sm:$0xff]
        %v616 = vld [vmem:[#allocation2 + $0x370] sm:$0xff]
        %v617 = vld [vmem:[#allocation2 + $0x378] sm:$0xff]
        %v618 = vld [vmem:[#allocation2 + $0x380] sm:$0xff]
        %v619 = vld [vmem:[#allocation2 + $0x388] sm:$0xff]
        %v620 = vld [vmem:[#allocation2 + $0x390] sm:$0xff]
        %v621 = vld [vmem:[#allocation2 + $0x398] sm:$0xff]
        %v622 = vld [vmem:[#allocation2 + $0x3a0] sm:$0xff]
        %v623 = vld [vmem:[#allocation2 + $0x3a8] sm:$0xff]
        %v624 = vld [vmem:[#allocation2 + $0x3b0] sm:$0xff]
        %v625 = vld [vmem:[#allocation2 + $0x3b8] sm:$0xff]
        %v626 = vld [vmem:[#allocation2 + $0x3c0] sm:$0xff]
        %v627 = vld [vmem:[#allocation2 + $0x3c8] sm:$0xff]
        %v628 = vld [vmem:[#allocation2 + $0x3d0] sm:$0xff]
        %v629 = vld [vmem:[#allocation2 + $0x3d8] sm:$0xff]
        %v630 = vld [vmem:[#allocation2 + $0x3e0] sm:$0xff]
        %v631 = vld [vmem:[#allocation2 + $0x3e8] sm:$0xff]
        %v632 = vld [vmem:[#allocation2 + $0x3f0] sm:$0xff]
        %v633 = vld [vmem:[#allocation2 + $0x3f8] sm:$0xff]
        %v634 = vld [vmem:[#allocation2 + $0x400] sm:$0xff]
        %v635 = vld [vmem:[#allocation2 + $0x408] sm:$0xff]
        %v636 = vld [vmem:[#allocation2 + $0x410] sm:$0xff]
        %v637 = vld [vmem:[#allocation2 + $0x418] sm:$0xff]
        %v638 = vld [vmem:[#allocation2 + $0x420] sm:$0xff]
        %v639 = vld [vmem:[#allocation2 + $0x428] sm:$0xff]
        %v640 = vld [vmem:[#allocation2 + $0x430] sm:$0xff]
        %v641 = vld [vmem:[#allocation2 + $0x438] sm:$0xff]
        %v642 = vld [vmem:[#allocation2 + $0x440] sm:$0xff]
        %v643 = vld [vmem:[#allocation2 + $0x448] sm:$0xff]
        %v644 = vld [vmem:[#allocation2 + $0x450] sm:$0xff]
        %v645 = vld [vmem:[#allocation2 + $0x458] sm:$0xff]
        %v646 = vld [vmem:[#allocation2 + $0x460] sm:$0xff]
        %v647 = vld [vmem:[#allocation2 + $0x468] sm:$0xff]
        %v648 = vld [vmem:[#allocation2 + $0x470] sm:$0xff]
        %v649 = vld [vmem:[#allocation2 + $0x478] sm:$0xff]
        %v650 = vld [vmem:[#allocation2 + $0x480] sm:$0xff]
        %v651 = vld [vmem:[#allocation2 + $0x488] sm:$0xff]
        %v652 = vld [vmem:[#allocation2 + $0x490] sm:$0xff]
        %v653 = vld [vmem:[#allocation2 + $0x498] sm:$0xff]
        %v654 = vld [vmem:[#allocation2 + $0x4a0] sm:$0xff]
        %v655 = vld [vmem:[#allocation2 + $0x4a8] sm:$0xff]
        %v656 = vld [vmem:[#allocation2 + $0x4b0] sm:$0xff]
        %v657 = vld [vmem:[#allocation2 + $0x4b8] sm:$0xff]
        %v658 = vld [vmem:[#allocation2 + $0x4c0] sm:$0xff]
        %v659 = vld [vmem:[#allocation2 + $0x4c8] sm:$0xff]
        %v660 = vld [vmem:[#allocation2 + $0x4d0] sm:$0xff]
        %v661 = vld [vmem:[#allocation2 + $0x4d8] sm:$0xff]
        %v662 = vld [vmem:[#allocation2 + $0x4e0] sm:$0xff]
        %v663 = vld [vmem:[#allocation2 + $0x4e8] sm:$0xff]
        %v664 = vld [vmem:[#allocation2 + $0x4f0] sm:$0xff]
        %v665 = vld [vmem:[#allocation2 + $0x4f8] sm:$0xff]
        %v666 = vld [vmem:[#allocation2 + $0x500] sm:$0xff]
        %v667 = vld [vmem:[#allocation2 + $0x508] sm:$0xff]
        %v668 = vld [vmem:[#allocation2 + $0x510] sm:$0xff]
        %v669 = vld [vmem:[#allocation2 + $0x518] sm:$0xff]
        %v670 = vld [vmem:[#allocation2 + $0x520] sm:$0xff]
        %v671 = vld [vmem:[#allocation2 + $0x528] sm:$0xff]
        %v672 = vld [vmem:[#allocation2 + $0x530] sm:$0xff]
        %v673 = vld [vmem:[#allocation2 + $0x538] sm:$0xff]
        %v674 = vld [vmem:[#allocation2 + $0x540] sm:$0xff]
        %v675 = vld [vmem:[#allocation2 + $0x548] sm:$0xff]
        %v676 = vld [vmem:[#allocation2 + $0x550] sm:$0xff]
        %v677 = vld [vmem:[#allocation2 + $0x558] sm:$0xff]
        %v678 = vld [vmem:[#allocation2 + $0x560] sm:$0xff]
        %v679 = vld [vmem:[#allocation2 + $0x568] sm:$0xff]
        %v680 = vld [vmem:[#allocation2 + $0x570] sm:$0xff]
        %v681 = vld [vmem:[#allocation2 + $0x578] sm:$0xff]
        %v682 = vld [vmem:[#allocation2 + $0x580] sm:$0xff]
        %v683 = vld [vmem:[#allocation2 + $0x588] sm:$0xff]
        %v684 = vld [vmem:[#allocation2 + $0x590] sm:$0xff]
        %v685 = vld [vmem:[#allocation2 + $0x598] sm:$0xff]
        %v686 = vld [vmem:[#allocation2 + $0x5a0] sm:$0xff]
        %v687 = vld [vmem:[#allocation2 + $0x5a8] sm:$0xff]
        %v688 = vld [vmem:[#allocation2 + $0x5b0] sm:$0xff]
        %v689 = vld [vmem:[#allocation2 + $0x5b8] sm:$0xff]
        %v690 = vld [vmem:[#allocation2 + $0x5c0] sm:$0xff]
        %v691 = vld [vmem:[#allocation2 + $0x5c8] sm:$0xff]
        %v692 = vld [vmem:[#allocation2 + $0x5d0] sm:$0xff]
        %v693 = vld [vmem:[#allocation2 + $0x5d8] sm:$0xff]
        %v694 = vld [vmem:[#allocation2 + $0x5e0] sm:$0xff]
        %v695 = vld [vmem:[#allocation2 + $0x5e8] sm:$0xff]
        %v696 = vld [vmem:[#allocation2 + $0x5f0] sm:$0xff]
        %v697 = vld [vmem:[#allocation2 + $0x5f8] sm:$0xff]
        %v698 = vld [vmem:[#allocation2 + $0x600] sm:$0xff]
        %v699 = vld [vmem:[#allocation2 + $0x608] sm:$0xff]
        %v700 = vld [vmem:[#allocation2 + $0x610] sm:$0xff]
        %v701 = vld [vmem:[#allocation2 + $0x618] sm:$0xff]
        %v702 = vld [vmem:[#allocation2 + $0x620] sm:$0xff]
        %v703 = vld [vmem:[#allocation2 + $0x628] sm:$0xff]
        %v704 = vld [vmem:[#allocation2 + $0x630] sm:$0xff]
        %v705 = vld [vmem:[#allocation2 + $0x638] sm:$0xff]
        %v706 = vld [vmem:[#allocation2 + $0x640] sm:$0xff]
        %v707 = vld [vmem:[#allocation2 + $0x648] sm:$0xff]
        %v708 = vld [vmem:[#allocation2 + $0x650] sm:$0xff]
        %v709 = vld [vmem:[#allocation2 + $0x658] sm:$0xff]
        %v710 = vld [vmem:[#allocation2 + $0x660] sm:$0xff]
        %v711 = vld [vmem:[#allocation2 + $0x668] sm:$0xff]
        %v712 = vld [vmem:[#allocation2 + $0x670] sm:$0xff]
        %v713 = vld [vmem:[#allocation2 + $0x678] sm:$0xff]
        %v714 = vld [vmem:[#allocation2 + $0x680] sm:$0xff]
        %v715 = vld [vmem:[#allocation2 + $0x688] sm:$0xff]
        %v716 = vld [vmem:[#allocation2 + $0x690] sm:$0xff]
        %v717 = vld [vmem:[#allocation2 + $0x698] sm:$0xff]
        %v718 = vld [vmem:[#allocation2 + $0x6a0] sm:$0xff]
        %v719 = vld [vmem:[#allocation2 + $0x6a8] sm:$0xff]
        %v720 = vld [vmem:[#allocation2 + $0x6b0] sm:$0xff]
        %v721 = vld [vmem:[#allocation2 + $0x6b8] sm:$0xff]
        %v722 = vld [vmem:[#allocation2 + $0x6c0] sm:$0xff]
        %v723 = vld [vmem:[#allocation2 + $0x6c8] sm:$0xff]
        %v724 = vld [vmem:[#allocation2 + $0x6d0] sm:$0xff]
        %v725 = vld [vmem:[#allocation2 + $0x6d8] sm:$0xff]
        %v726 = vld [vmem:[#allocation2 + $0x6e0] sm:$0xff]
        %v727 = vld [vmem:[#allocation2 + $0x6e8] sm:$0xff]
        %v728 = vld [vmem:[#allocation2 + $0x6f0] sm:$0xff]
        %v729 = vld [vmem:[#allocation2 + $0x6f8] sm:$0xff]
        %v730 = vld [vmem:[#allocation2 + $0x700] sm:$0xff]
        %v731 = vld [vmem:[#allocation2 + $0x708] sm:$0xff]
        %v732 = vld [vmem:[#allocation2 + $0x710] sm:$0xff]
        %v733 = vld [vmem:[#allocation2 + $0x718] sm:$0xff]
        %v734 = vld [vmem:[#allocation2 + $0x720] sm:$0xff]
        %v735 = vld [vmem:[#allocation2 + $0x728] sm:$0xff]
        %v736 = vld [vmem:[#allocation2 + $0x730] sm:$0xff]
        %v737 = vld [vmem:[#allocation2 + $0x738] sm:$0xff]
        %v738 = vld [vmem:[#allocation2 + $0x740] sm:$0xff]
        %v739 = vld [vmem:[#allocation2 + $0x748] sm:$0xff]
        %v740 = vld [vmem:[#allocation2 + $0x750] sm:$0xff]
        %v741 = vld [vmem:[#allocation2 + $0x758] sm:$0xff]
        %v742 = vld [vmem:[#allocation2 + $0x760] sm:$0xff]
        %v743 = vld [vmem:[#allocation2 + $0x768] sm:$0xff]
        %v744 = vld [vmem:[#allocation2 + $0x770] sm:$0xff]
        %v745 = vld [vmem:[#allocation2 + $0x778] sm:$0xff]
        %v746 = vld [vmem:[#allocation2 + $0x780] sm:$0xff]
        %v747 = vld [vmem:[#allocation2 + $0x788] sm:$0xff]
        %v748 = vld [vmem:[#allocation2 + $0x790] sm:$0xff]
        %v749 = vld [vmem:[#allocation2 + $0x798] sm:$0xff]
        %v750 = vld [vmem:[#allocation2 + $0x7a0] sm:$0xff]
        %v751 = vld [vmem:[#allocation2 + $0x7a8] sm:$0xff]
        %v752 = vld [vmem:[#allocation2 + $0x7b0] sm:$0xff]
        %v753 = vld [vmem:[#allocation2 + $0x7b8] sm:$0xff]
        %v754 = vld [vmem:[#allocation2 + $0x7c0] sm:$0xff]
        %v755 = vld [vmem:[#allocation2 + $0x7c8] sm:$0xff]
        %v756 = vld [vmem:[#allocation2 + $0x7d0] sm:$0xff]
        %v757 = vld [vmem:[#allocation2 + $0x7d8] sm:$0xff]
        %v758 = vld [vmem:[#allocation2 + $0x7e0] sm:$0xff]
        %v759 = vld [vmem:[#allocation2 + $0x7e8] sm:$0xff]
        %v760 = vld [vmem:[#allocation2 + $0x7f0] sm:$0xff]
        %v761 = vld [vmem:[#allocation2 + $0x7f8] sm:$0xff]
        %v762 = vld [vmem:[#allocation2 + $0x800] sm:$0xff]
        %v763 = vld [vmem:[#allocation2 + $0x808] sm:$0xff]
        %v764 = vld [vmem:[#allocation2 + $0x810] sm:$0xff]
        %v765 = vld [vmem:[#allocation2 + $0x818] sm:$0xff]
        %v766 = vld [vmem:[#allocation2 + $0x820] sm:$0xff]
        %v767 = vld [vmem:[#allocation2 + $0x828] sm:$0xff]
        %v768 = vld [vmem:[#allocation2 + $0x830] sm:$0xff]
        %v769 = vld [vmem:[#allocation2 + $0x838] sm:$0xff]
        %v770 = vld [vmem:[#allocation2 + $0x840] sm:$0xff]
        %v771 = vld [vmem:[#allocation2 + $0x848] sm:$0xff]
        %v772 = vld [vmem:[#allocation2 + $0x850] sm:$0xff]
        %v773 = vld [vmem:[#allocation2 + $0x858] sm:$0xff]
        %v774 = vld [vmem:[#allocation2 + $0x860] sm:$0xff]
        %v775 = vld [vmem:[#allocation2 + $0x868] sm:$0xff]
        %v776 = vld [vmem:[#allocation2 + $0x870] sm:$0xff]
        %v777 = vld [vmem:[#allocation2 + $0x878] sm:$0xff]
        %v778 = vld [vmem:[#allocation2 + $0x880] sm:$0xff]
        %v779 = vld [vmem:[#allocation2 + $0x888] sm:$0xff]
        %v780 = vld [vmem:[#allocation2 + $0x890] sm:$0xff]
        %v781 = vld [vmem:[#allocation2 + $0x898] sm:$0xff]
        %v782 = vld [vmem:[#allocation2 + $0x8a0] sm:$0xff]
        %v783 = vld [vmem:[#allocation2 + $0x8a8] sm:$0xff]
        %v784 = vld [vmem:[#allocation2 + $0x8b0] sm:$0xff]
        %v785 = vld [vmem:[#allocation2 + $0x8b8] sm:$0xff]
        %v786 = vld [vmem:[#allocation2 + $0x8c0] sm:$0xff]
        %v787 = vld [vmem:[#allocation2 + $0x8c8] sm:$0xff]
        %v788 = vld [vmem:[#allocation2 + $0x8d0] sm:$0xff]
        %v789 = vld [vmem:[#allocation2 + $0x8d8] sm:$0xff]
        %v790 = vld [vmem:[#allocation2 + $0x8e0] sm:$0xff]
        %v791 = vld [vmem:[#allocation2 + $0x8e8] sm:$0xff]
        %v792 = vld [vmem:[#allocation2 + $0x8f0] sm:$0xff]
        %v793 = vld [vmem:[#allocation2 + $0x8f8] sm:$0xff]
        %v794 = vld [vmem:[#allocation2 + $0x900] sm:$0xff]
        %v795 = vld [vmem:[#allocation2 + $0x908] sm:$0xff]
        %v796 = vld [vmem:[#allocation2 + $0x910] sm:$0xff]
        %v797 = vld [vmem:[#allocation2 + $0x918] sm:$0xff]
        %v798 = vld [vmem:[#allocation2 + $0x920] sm:$0xff]
        %v799 = vld [vmem:[#allocation2 + $0x928] sm:$0xff]
        %v800 = vld [vmem:[#allocation2 + $0x930] sm:$0xff]
        %v801 = vld [vmem:[#allocation2 + $0x938] sm:$0xff]
        %v802 = vld [vmem:[#allocation2 + $0x940] sm:$0xff]
        %v803 = vld [vmem:[#allocation2 + $0x948] sm:$0xff]
        %v804 = vld [vmem:[#allocation2 + $0x950] sm:$0xff]
        %v805 = vld [vmem:[#allocation2 + $0x958] sm:$0xff]
        %v806 = vld [vmem:[#allocation2 + $0x960] sm:$0xff]
        %v807 = vld [vmem:[#allocation2 + $0x968] sm:$0xff]
        %v808 = vld [vmem:[#allocation2 + $0x970] sm:$0xff]
        %v809 = vld [vmem:[#allocation2 + $0x978] sm:$0xff]
        %v810 = vld [vmem:[#allocation2 + $0x980] sm:$0xff]
        %v811 = vld [vmem:[#allocation2 + $0x988] sm:$0xff]
        %v812 = vld [vmem:[#allocation2 + $0x990] sm:$0xff]
        %v813 = vld [vmem:[#allocation2 + $0x998] sm:$0xff]
        %v814 = vld [vmem:[#allocation2 + $0x9a0] sm:$0xff]
        %v815 = vld [vmem:[#allocation2 + $0x9a8] sm:$0xff]
        %v816 = vld [vmem:[#allocation2 + $0x9b0] sm:$0xff]
        %v817 = vld [vmem:[#allocation2 + $0x9b8] sm:$0xff]
        %v818 = vld [vmem:[#allocation2 + $0x9c0] sm:$0xff]
        %v819 = vld [vmem:[#allocation2 + $0x9c8] sm:$0xff]
        %v820 = vld [vmem:[#allocation2 + $0x9d0] sm:$0xff]
        %v821 = vld [vmem:[#allocation2 + $0x9d8] sm:$0xff]
        %v822 = vld [vmem:[#allocation2 + $0x9e0] sm:$0xff]
        %v823 = vld [vmem:[#allocation2 + $0x9e8] sm:$0xff]
        %v824 = vld [vmem:[#allocation2 + $0x9f0] sm:$0xff]
        %v825 = vld [vmem:[#allocation2 + $0x9f8] sm:$0xff]
        %v826 = vld [vmem:[#allocation2 + $0xa00] sm:$0xff]
        %v827 = vld [vmem:[#allocation2 + $0xa08] sm:$0xff]
        %v828 = vld [vmem:[#allocation2 + $0xa10] sm:$0xff]
        %v829 = vld [vmem:[#allocation2 + $0xa18] sm:$0xff]
        %v830 = vld [vmem:[#allocation2 + $0xa20] sm:$0xff]
        %v831 = vld [vmem:[#allocation2 + $0xa28] sm:$0xff]
        %v832 = vld [vmem:[#allocation2 + $0xa30] sm:$0xff]
        %v833 = vld [vmem:[#allocation2 + $0xa38] sm:$0xff]
        %v834 = vld [vmem:[#allocation2 + $0xa40] sm:$0xff]
        %v835 = vld [vmem:[#allocation2 + $0xa48] sm:$0xff]
        %v836 = vld [vmem:[#allocation2 + $0xa50] sm:$0xff]
        %v837 = vld [vmem:[#allocation2 + $0xa58] sm:$0xff]
        %v838 = vld [vmem:[#allocation2 + $0xa60] sm:$0xff]
        %v839 = vld [vmem:[#allocation2 + $0xa68] sm:$0xff]
        %v840 = vld [vmem:[#allocation2 + $0xa70] sm:$0xff]
        %v841 = vld [vmem:[#allocation2 + $0xa78] sm:$0xff]
        %v842 = vld [vmem:[#allocation2 + $0xa80] sm:$0xff]
        %v843 = vld [vmem:[#allocation2 + $0xa88] sm:$0xff]
        %v844 = vld [vmem:[#allocation2 + $0xa90] sm:$0xff]
        %v845 = vld [vmem:[#allocation2 + $0xa98] sm:$0xff]
        %v846 = vld [vmem:[#allocation2 + $0xaa0] sm:$0xff]
        %v847 = vld [vmem:[#allocation2 + $0xaa8] sm:$0xff]
        %v848 = vld [vmem:[#allocation2 + $0xab0] sm:$0xff]
        %v849 = vld [vmem:[#allocation2 + $0xab8] sm:$0xff]
        %v850 = vld [vmem:[#allocation2 + $0xac0] sm:$0xff]
        %v851 = vld [vmem:[#allocation2 + $0xac8] sm:$0xff]
        %v852 = vld [vmem:[#allocation2 + $0xad0] sm:$0xff]
        %v853 = vld [vmem:[#allocation2 + $0xad8] sm:$0xff]
        %v854 = vld [vmem:[#allocation2 + $0xae0] sm:$0xff]
        %v855 = vld [vmem:[#allocation2 + $0xae8] sm:$0xff]
        %v856 = vld [vmem:[#allocation2 + $0xaf0] sm:$0xff]
        %v857 = vld [vmem:[#allocation2 + $0xaf8] sm:$0xff]
        %v858 = vld [vmem:[#allocation2 + $0xb00] sm:$0xff]
        %v859 = vld [vmem:[#allocation2 + $0xb08] sm:$0xff]
        %v860 = vld [vmem:[#allocation2 + $0xb10] sm:$0xff]
        %v861 = vld [vmem:[#allocation2 + $0xb18] sm:$0xff]
        %v862 = vld [vmem:[#allocation2 + $0xb20] sm:$0xff]
        %v863 = vld [vmem:[#allocation2 + $0xb28] sm:$0xff]
        %v864 = vld [vmem:[#allocation2 + $0xb30] sm:$0xff]
        %v865 = vld [vmem:[#allocation2 + $0xb38] sm:$0xff]
        %v866 = vld [vmem:[#allocation2 + $0xb40] sm:$0xff]
        %v867 = vld [vmem:[#allocation2 + $0xb48] sm:$0xff]
        %v868 = vld [vmem:[#allocation2 + $0xb50] sm:$0xff]
        %v869 = vld [vmem:[#allocation2 + $0xb58] sm:$0xff]
        %v870 = vld [vmem:[#allocation2 + $0xb60] sm:$0xff]
        %v871 = vld [vmem:[#allocation2 + $0xb68] sm:$0xff]
        %v872 = vld [vmem:[#allocation2 + $0xb70] sm:$0xff]
        %v873 = vld [vmem:[#allocation2 + $0xb78] sm:$0xff]
        %v874 = vld [vmem:[#allocation2 + $0xb80] sm:$0xff]
        %v875 = vld [vmem:[#allocation2 + $0xb88] sm:$0xff]
        %v876 = vld [vmem:[#allocation2 + $0xb90] sm:$0xff]
        %v877 = vld [vmem:[#allocation2 + $0xb98] sm:$0xff]
        %v878 = vld [vmem:[#allocation2 + $0xba0] sm:$0xff]
        %v879 = vld [vmem:[#allocation2 + $0xba8] sm:$0xff]
        %v880 = vld [vmem:[#allocation2 + $0xbb0] sm:$0xff]
        %v881 = vld [vmem:[#allocation2 + $0xbb8] sm:$0xff]
        %v882 = vld [vmem:[#allocation2 + $0xbc0] sm:$0xff]
        %v883 = vld [vmem:[#allocation2 + $0xbc8] sm:$0xff]
        %v884 = vld [vmem:[#allocation2 + $0xbd0] sm:$0xff]
        %v885 = vld [vmem:[#allocation2 + $0xbd8] sm:$0xff]
        %v886 = vld [vmem:[#allocation2 + $0xbe0] sm:$0xff]
        %v887 = vld [vmem:[#allocation2 + $0xbe8] sm:$0xff]
        %v888 = vld [vmem:[#allocation2 + $0xbf0] sm:$0xff]
        %v889 = vld [vmem:[#allocation2 + $0xbf8] sm:$0xff]
        %v890 = vld [vmem:[#allocation2 + $0xc00] sm:$0xff]
        %v891 = vld [vmem:[#allocation2 + $0xc08] sm:$0xff]
        %v892 = vld [vmem:[#allocation2 + $0xc10] sm:$0xff]
        %v893 = vld [vmem:[#allocation2 + $0xc18] sm:$0xff]
        %v894 = vld [vmem:[#allocation2 + $0xc20] sm:$0xff]
        %v895 = vld [vmem:[#allocation2 + $0xc28] sm:$0xff]
        %v896 = vld [vmem:[#allocation2 + $0xc30] sm:$0xff]
        %v897 = vld [vmem:[#allocation2 + $0xc38] sm:$0xff]
        %v898 = vld [vmem:[#allocation2 + $0xc40] sm:$0xff]
        %v899 = vld [vmem:[#allocation2 + $0xc48] sm:$0xff]
        %v900 = vld [vmem:[#allocation2 + $0xc50] sm:$0xff]
        %v901 = vld [vmem:[#allocation2 + $0xc58] sm:$0xff]
        %v902 = vld [vmem:[#allocation2 + $0xc60] sm:$0xff]
        %v903 = vld [vmem:[#allocation2 + $0xc68] sm:$0xff]
        %v904 = vld [vmem:[#allocation2 + $0xc70] sm:$0xff]
        %v905 = vld [vmem:[#allocation2 + $0xc78] sm:$0xff]
        %v906 = vld [vmem:[#allocation2 + $0xc80] sm:$0xff]
        %v907 = vld [vmem:[#allocation2 + $0xc88] sm:$0xff]
        %v908 = vld [vmem:[#allocation2 + $0xc90] sm:$0xff]
        %v909 = vld [vmem:[#allocation2 + $0xc98] sm:$0xff]
        %v910 = vld [vmem:[#allocation2 + $0xca0] sm:$0xff]
        %v911 = vld [vmem:[#allocation2 + $0xca8] sm:$0xff]
        %v912 = vld [vmem:[#allocation2 + $0xcb0] sm:$0xff]
        %v913 = vld [vmem:[#allocation2 + $0xcb8] sm:$0xff]
        %v914 = vld [vmem:[#allocation2 + $0xcc0] sm:$0xff]
        %v915 = vld [vmem:[#allocation2 + $0xcc8] sm:$0xff]
        %v916 = vld [vmem:[#allocation2 + $0xcd0] sm:$0xff]
        %v917 = vld [vmem:[#allocation2 + $0xcd8] sm:$0xff]
        %v918 = vld [vmem:[#allocation2 + $0xce0] sm:$0xff]
        %v919 = vld [vmem:[#allocation2 + $0xce8] sm:$0xff]
        %v920 = vld [vmem:[#allocation2 + $0xcf0] sm:$0xff]
        %v921 = vld [vmem:[#allocation2 + $0xcf8] sm:$0xff]
        %v922 = vld [vmem:[#allocation2 + $0xd00] sm:$0xff]
        %v923 = vld [vmem:[#allocation2 + $0xd08] sm:$0xff]
        %v924 = vld [vmem:[#allocation2 + $0xd10] sm:$0xff]
        %v925 = vld [vmem:[#allocation2 + $0xd18] sm:$0xff]
        %v926 = vld [vmem:[#allocation2 + $0xd20] sm:$0xff]
        %v927 = vld [vmem:[#allocation2 + $0xd28] sm:$0xff]
        %v928 = vld [vmem:[#allocation2 + $0xd30] sm:$0xff]
        %v929 = vld [vmem:[#allocation2 + $0xd38] sm:$0xff]
        %v930 = vld [vmem:[#allocation2 + $0xd40] sm:$0xff]
        %v931 = vld [vmem:[#allocation2 + $0xd48] sm:$0xff]
        %v932 = vld [vmem:[#allocation2 + $0xd50] sm:$0xff]
        %v933 = vld [vmem:[#allocation2 + $0xd58] sm:$0xff]
        %v934 = vld [vmem:[#allocation2 + $0xd60] sm:$0xff]
        %v935 = vld [vmem:[#allocation2 + $0xd68] sm:$0xff]
        %v936 = vld [vmem:[#allocation2 + $0xd70] sm:$0xff]
        %v937 = vld [vmem:[#allocation2 + $0xd78] sm:$0xff]
        %v938 = vld [vmem:[#allocation5] sm:$0xf]
        %v940 = vperm.slane %v938, 0
        %v941 = vperm.slane %v938, 1
        %v942 = vperm.slane %v938, 2
        %v943 = vperm.slane %v938, 3
        %v948 = vsel %vm455, %v271, 0
        %v950 = vsel %vm455, %v274, 0
        %v952 = vsel %vm455, %v277, 0
        %v954 = vsel %vm455, %v280, 0
        %v956 = vsel %vm455, %v283, 0
        %v958 = vsel %vm455, %v286, 0
        %v960 = vsel %vm455, %v302, 0
        %v962 = vsel %vm455, %v310, 0
        %964 = vmatpush.msra.mxu0 %v566
        %965 = vmatpush.msra.mxu0 %v562
        %966 = vmatpush.msra.mxu0 %v558
        %967 = vmatpush.msra.mxu0 %v554
        %968 = vmatpush.msra.mxu0 %v550
        %969 = vmatpush.msra.mxu0 %v546
        %970 = vmatpush.msra.mxu0 %v542
        %971 = vmatpush.msra.mxu0 %v538
        %972 = vmatpush.msra.mxu0 %v534
        %973 = vmatpush.msra.mxu0 %v530
        %974 = vmatpush.msra.mxu0 %v526
        %975 = vmatpush.msra.mxu0 %v522
        %976 = vmatpush.msra.mxu0 %v518
        %977 = vmatpush.msra.mxu0 %v514
        %978 = vmatpush.msra.mxu0 %v510
        %979 = vmatpush.msra.mxu0 %v506
        %980 = vmatmul.f32.gmra.mxu0 %v456
        %v981 = vpop.f32.mrf.mxu0
        %v982 = vadd.f32 %v940, %v981
        %983 = vmatmul.f32.gmra.mxu0 %v457
        %v984 = vpop.f32.mrf.mxu0
        %v985 = vadd.f32 %v940, %v984
        %986 = vmatmul.f32.gmra.mxu0 %v458
        %v987 = vpop.f32.mrf.mxu0
        %v988 = vadd.f32 %v940, %v987
        %989 = vmatmul.f32.gmra.mxu0 %v459
        %v990 = vpop.f32.mrf.mxu0
        %v991 = vadd.f32 %v940, %v990
        %992 = vmatmul.f32.gmra.mxu0 %v460
        %v993 = vpop.f32.mrf.mxu0
        %v994 = vadd.f32 %v940, %v993
        %995 = vmatmul.f32.gmra.mxu0 %v461
        %v996 = vpop.f32.mrf.mxu0
        %v997 = vadd.f32 %v940, %v996
        %998 = vmatmul.f32.gmra.mxu0 %v462
        %v999 = vpop.f32.mrf.mxu0
        %v1000 = vadd.f32 %v940, %v999
        %1001 = vmatmul.f32.gmra.mxu0 %v463
        %v1002 = vpop.f32.mrf.mxu0
        %v1003 = vadd.f32 %v940, %v1002
        %1004 = vdwg.mxu0
        %1005 = vmatpush.msra.mxu0 %v630
        %1006 = vmatpush.msra.mxu0 %v626
        %1007 = vmatpush.msra.mxu0 %v622
        %1008 = vmatpush.msra.mxu0 %v618
        %1009 = vmatpush.msra.mxu0 %v614
        %1010 = vmatpush.msra.mxu0 %v610
        %1011 = vmatpush.msra.mxu0 %v606
        %1012 = vmatpush.msra.mxu0 %v602
        %1013 = vmatpush.msra.mxu0 %v598
        %1014 = vmatpush.msra.mxu0 %v594
        %1015 = vmatpush.msra.mxu0 %v590
        %1016 = vmatpush.msra.mxu0 %v586
        %1017 = vmatpush.msra.mxu0 %v582
        %1018 = vmatpush.msra.mxu0 %v578
        %1019 = vmatpush.msra.mxu0 %v574
        %1020 = vmatpush.msra.mxu0 %v570
        %1021 = vmatmul.f32.gmra.mxu0 %v465
        %v1022 = vpop.f32.mrf.mxu0
        %v1023 = vadd.f32 %v982, %v1022
        %1024 = vmatmul.f32.gmra.mxu0 %v466
        %v1025 = vpop.f32.mrf.mxu0
        %v1026 = vadd.f32 %v985, %v1025
        %1027 = vmatmul.f32.gmra.mxu0 %v467
        %v1028 = vpop.f32.mrf.mxu0
        %v1029 = vadd.f32 %v988, %v1028
        %1030 = vmatmul.f32.gmra.mxu0 %v468
        %v1031 = vpop.f32.mrf.mxu0
        %v1032 = vadd.f32 %v991, %v1031
        %1033 = vmatmul.f32.gmra.mxu0 %v469
        %v1034 = vpop.f32.mrf.mxu0
        %v1035 = vadd.f32 %v994, %v1034
        %1036 = vmatmul.f32.gmra.mxu0 %v470
        %v1037 = vpop.f32.mrf.mxu0
        %v1038 = vadd.f32 %v997, %v1037
        %1039 = vmatmul.f32.gmra.mxu0 %v471
        %v1040 = vpop.f32.mrf.mxu0
        %v1041 = vadd.f32 %v1000, %v1040
        %1042 = vmatmul.f32.gmra.mxu0 %v472
        %v1043 = vpop.f32.mrf.mxu0
        %v1044 = vadd.f32 %v1003, %v1043
        %1045 = vdwg.mxu0
        %1046 = vmatpush.msra.mxu0 %v694
        %1047 = vmatpush.msra.mxu0 %v690
        %1048 = vmatpush.msra.mxu0 %v686
        %1049 = vmatpush.msra.mxu0 %v682
        %1050 = vmatpush.msra.mxu0 %v678
        %1051 = vmatpush.msra.mxu0 %v674
        %1052 = vmatpush.msra.mxu0 %v670
        %1053 = vmatpush.msra.mxu0 %v666
        %1054 = vmatpush.msra.mxu0 %v662
        %1055 = vmatpush.msra.mxu0 %v658
        %1056 = vmatpush.msra.mxu0 %v654
        %1057 = vmatpush.msra.mxu0 %v650
        %1058 = vmatpush.msra.mxu0 %v646
        %1059 = vmatpush.msra.mxu0 %v642
        %1060 = vmatpush.msra.mxu0 %v638
        %1061 = vmatpush.msra.mxu0 %v634
        %1062 = vmatmul.f32.gmra.mxu0 %v474
        %v1063 = vpop.f32.mrf.mxu0
        %v1064 = vadd.f32 %v1023, %v1063
        %1065 = vmatmul.f32.gmra.mxu0 %v475
        %v1066 = vpop.f32.mrf.mxu0
        %v1067 = vadd.f32 %v1026, %v1066
        %1068 = vmatmul.f32.gmra.mxu0 %v476
        %v1069 = vpop.f32.mrf.mxu0
        %v1070 = vadd.f32 %v1029, %v1069
        %1071 = vmatmul.f32.gmra.mxu0 %v477
        %v1072 = vpop.f32.mrf.mxu0
        %v1073 = vadd.f32 %v1032, %v1072
        %1074 = vmatmul.f32.gmra.mxu0 %v478
        %v1075 = vpop.f32.mrf.mxu0
        %v1076 = vadd.f32 %v1035, %v1075
        %1077 = vmatmul.f32.gmra.mxu0 %v479
        %v1078 = vpop.f32.mrf.mxu0
        %v1079 = vadd.f32 %v1038, %v1078
        %1080 = vmatmul.f32.gmra.mxu0 %v480
        %v1081 = vpop.f32.mrf.mxu0
        %v1082 = vadd.f32 %v1041, %v1081
        %1083 = vmatmul.f32.gmra.mxu0 %v481
        %v1084 = vpop.f32.mrf.mxu0
        %v1085 = vadd.f32 %v1044, %v1084
        %1086 = vdwg.mxu0
        %1087 = vmatpush.msra.mxu0 %v758
        %1088 = vmatpush.msra.mxu0 %v754
        %1089 = vmatpush.msra.mxu0 %v750
        %1090 = vmatpush.msra.mxu0 %v746
        %1091 = vmatpush.msra.mxu0 %v742
        %1092 = vmatpush.msra.mxu0 %v738
        %1093 = vmatpush.msra.mxu0 %v734
        %1094 = vmatpush.msra.mxu0 %v730
        %1095 = vmatpush.msra.mxu0 %v726
        %1096 = vmatpush.msra.mxu0 %v722
        %1097 = vmatpush.msra.mxu0 %v718
        %1098 = vmatpush.msra.mxu0 %v714
        %1099 = vmatpush.msra.mxu0 %v710
        %1100 = vmatpush.msra.mxu0 %v706
        %1101 = vmatpush.msra.mxu0 %v702
        %1102 = vmatpush.msra.mxu0 %v698
        %1103 = vmatmul.f32.gmra.mxu0 %v482
        %v1104 = vpop.f32.mrf.mxu0
        %v1105 = vadd.f32 %v1064, %v1104
        %1106 = vmatmul.f32.gmra.mxu0 %v483
        %v1107 = vpop.f32.mrf.mxu0
        %v1108 = vadd.f32 %v1067, %v1107
        %1109 = vmatmul.f32.gmra.mxu0 %v484
        %v1110 = vpop.f32.mrf.mxu0
        %v1111 = vadd.f32 %v1070, %v1110
        %1112 = vmatmul.f32.gmra.mxu0 %v485
        %v1113 = vpop.f32.mrf.mxu0
        %v1114 = vadd.f32 %v1073, %v1113
        %1115 = vmatmul.f32.gmra.mxu0 %v486
        %v1116 = vpop.f32.mrf.mxu0
        %v1117 = vadd.f32 %v1076, %v1116
        %1118 = vmatmul.f32.gmra.mxu0 %v487
        %v1119 = vpop.f32.mrf.mxu0
        %v1120 = vadd.f32 %v1079, %v1119
        %1121 = vmatmul.f32.gmra.mxu0 %v488
        %v1122 = vpop.f32.mrf.mxu0
        %v1123 = vadd.f32 %v1082, %v1122
        %1124 = vmatmul.f32.gmra.mxu0 %v489
        %v1125 = vpop.f32.mrf.mxu0
        %v1126 = vadd.f32 %v1085, %v1125
        %1127 = vdwg.mxu0
        %1128 = vmatpush.msra.mxu0 %v822
        %1129 = vmatpush.msra.mxu0 %v818
        %1130 = vmatpush.msra.mxu0 %v814
        %1131 = vmatpush.msra.mxu0 %v810
        %1132 = vmatpush.msra.mxu0 %v806
        %1133 = vmatpush.msra.mxu0 %v802
        %1134 = vmatpush.msra.mxu0 %v798
        %1135 = vmatpush.msra.mxu0 %v794
        %1136 = vmatpush.msra.mxu0 %v790
        %1137 = vmatpush.msra.mxu0 %v786
        %1138 = vmatpush.msra.mxu0 %v782
        %1139 = vmatpush.msra.mxu0 %v778
        %1140 = vmatpush.msra.mxu0 %v774
        %1141 = vmatpush.msra.mxu0 %v770
        %1142 = vmatpush.msra.mxu0 %v766
        %1143 = vmatpush.msra.mxu0 %v762
        %1144 = vmatmul.f32.gmra.mxu0 %v490
        %v1145 = vpop.f32.mrf.mxu0
        %v1146 = vadd.f32 %v1105, %v1145
        %1147 = vmatmul.f32.gmra.mxu0 %v491
        %v1148 = vpop.f32.mrf.mxu0
        %v1149 = vadd.f32 %v1108, %v1148
        %1150 = vmatmul.f32.gmra.mxu0 %v492
        %v1151 = vpop.f32.mrf.mxu0
        %v1152 = vadd.f32 %v1111, %v1151
        %1153 = vmatmul.f32.gmra.mxu0 %v493
        %v1154 = vpop.f32.mrf.mxu0
        %v1155 = vadd.f32 %v1114, %v1154
        %1156 = vmatmul.f32.gmra.mxu0 %v494
        %v1157 = vpop.f32.mrf.mxu0
        %v1158 = vadd.f32 %v1117, %v1157
        %1159 = vmatmul.f32.gmra.mxu0 %v495
        %v1160 = vpop.f32.mrf.mxu0
        %v1161 = vadd.f32 %v1120, %v1160
        %1162 = vmatmul.f32.gmra.mxu0 %v496
        %v1163 = vpop.f32.mrf.mxu0
        %v1164 = vadd.f32 %v1123, %v1163
        %1165 = vmatmul.f32.gmra.mxu0 %v497
        %v1166 = vpop.f32.mrf.mxu0
        %v1167 = vadd.f32 %v1126, %v1166
        %1168 = vdwg.mxu0
        %1169 = vmatpush.msra.mxu0 %v886
        %1170 = vmatpush.msra.mxu0 %v882
        %1171 = vmatpush.msra.mxu0 %v878
        %1172 = vmatpush.msra.mxu0 %v874
        %1173 = vmatpush.msra.mxu0 %v870
        %1174 = vmatpush.msra.mxu0 %v866
        %1175 = vmatpush.msra.mxu0 %v862
        %1176 = vmatpush.msra.mxu0 %v858
        %1177 = vmatpush.msra.mxu0 %v854
        %1178 = vmatpush.msra.mxu0 %v850
        %1179 = vmatpush.msra.mxu0 %v846
        %1180 = vmatpush.msra.mxu0 %v842
        %1181 = vmatpush.msra.mxu0 %v838
        %1182 = vmatpush.msra.mxu0 %v834
        %1183 = vmatpush.msra.mxu0 %v830
        %1184 = vmatpush.msra.mxu0 %v826
        %1185 = vmatmul.f32.gmra.mxu0 %v498
        %v1186 = vpop.f32.mrf.mxu0
        %v1187 = vadd.f32 %v1146, %v1186
        %1188 = vmatmul.f32.gmra.mxu0 %v499
        %v1189 = vpop.f32.mrf.mxu0
        %v1190 = vadd.f32 %v1149, %v1189
        %1191 = vmatmul.f32.gmra.mxu0 %v500
        %v1192 = vpop.f32.mrf.mxu0
        %v1193 = vadd.f32 %v1152, %v1192
        %1194 = vmatmul.f32.gmra.mxu0 %v501
        %v1195 = vpop.f32.mrf.mxu0
        %v1196 = vadd.f32 %v1155, %v1195
        %1197 = vmatmul.f32.gmra.mxu0 %v502
        %v1198 = vpop.f32.mrf.mxu0
        %v1199 = vadd.f32 %v1158, %v1198
        %1200 = vmatmul.f32.gmra.mxu0 %v503
        %v1201 = vpop.f32.mrf.mxu0
        %v1202 = vadd.f32 %v1161, %v1201
        %1203 = vmatmul.f32.gmra.mxu0 %v504
        %v1204 = vpop.f32.mrf.mxu0
        %v1205 = vadd.f32 %v1164, %v1204
        %1206 = vmatmul.f32.gmra.mxu0 %v505
        %v1207 = vpop.f32.mrf.mxu0
        %v1208 = vadd.f32 %v1167, %v1207
        %1209 = vdwg.mxu0
        %1210 = vmatpush.msra.mxu0 0.0
        %1211 = vmatpush.msra.mxu0 0.0
        %1212 = vmatpush.msra.mxu0 0.0
        %1213 = vmatpush.msra.mxu0 0.0
        %1214 = vmatpush.msra.mxu0 %v934
        %1215 = vmatpush.msra.mxu0 %v930
        %1216 = vmatpush.msra.mxu0 %v926
        %1217 = vmatpush.msra.mxu0 %v922
        %1218 = vmatpush.msra.mxu0 %v918
        %1219 = vmatpush.msra.mxu0 %v914
        %1220 = vmatpush.msra.mxu0 %v910
        %1221 = vmatpush.msra.mxu0 %v906
        %1222 = vmatpush.msra.mxu0 %v902
        %1223 = vmatpush.msra.mxu0 %v898
        %1224 = vmatpush.msra.mxu0 %v894
        %1225 = vmatpush.msra.mxu0 %v890
        %1226 = vmatmul.f32.gmra.mxu0 %v948
        %v1227 = vpop.f32.mrf.mxu0
        %v1228 = vadd.f32 %v1187, %v1227
        %1229 = vmatmul.f32.gmra.mxu0 %v950
        %v1230 = vpop.f32.mrf.mxu0
        %v1231 = vadd.f32 %v1190, %v1230
        %1232 = vmatmul.f32.gmra.mxu0 %v952
        %v1233 = vpop.f32.mrf.mxu0
        %v1234 = vadd.f32 %v1193, %v1233
        %1235 = vmatmul.f32.gmra.mxu0 %v954
        %v1236 = vpop.f32.mrf.mxu0
        %v1237 = vadd.f32 %v1196, %v1236
        %1238 = vmatmul.f32.gmra.mxu0 %v956
        %v1239 = vpop.f32.mrf.mxu0
        %v1240 = vadd.f32 %v1199, %v1239
        %1241 = vmatmul.f32.gmra.mxu0 %v958
        %v1242 = vpop.f32.mrf.mxu0
        %v1243 = vadd.f32 %v1202, %v1242
        %1244 = vmatmul.f32.gmra.mxu0 %v960
        %v1245 = vpop.f32.mrf.mxu0
        %v1246 = vadd.f32 %v1205, %v1245
        %1247 = vmatmul.f32.gmra.mxu0 %v962
        %v1248 = vpop.f32.mrf.mxu0
        %v1249 = vadd.f32 %v1208, %v1248
        %1250 = vdwg.mxu0
        %1251 = vmatpush.msra.mxu0 %v567
        %1252 = vmatpush.msra.mxu0 %v563
        %1253 = vmatpush.msra.mxu0 %v559
        %1254 = vmatpush.msra.mxu0 %v555
        %1255 = vmatpush.msra.mxu0 %v551
        %1256 = vmatpush.msra.mxu0 %v547
        %1257 = vmatpush.msra.mxu0 %v543
        %1258 = vmatpush.msra.mxu0 %v539
        %1259 = vmatpush.msra.mxu0 %v535
        %1260 = vmatpush.msra.mxu0 %v531
        %1261 = vmatpush.msra.mxu0 %v527
        %1262 = vmatpush.msra.mxu0 %v523
        %1263 = vmatpush.msra.mxu0 %v519
        %1264 = vmatpush.msra.mxu0 %v515
        %1265 = vmatpush.msra.mxu0 %v511
        %1266 = vmatpush.msra.mxu0 %v507
        %1267 = vmatmul.f32.gmra.mxu0 %v456
        %v1268 = vpop.f32.mrf.mxu0
        %v1269 = vadd.f32 %v941, %v1268
        %1270 = vmatmul.f32.gmra.mxu0 %v457
        %v1271 = vpop.f32.mrf.mxu0
        %v1272 = vadd.f32 %v941, %v1271
        %1273 = vmatmul.f32.gmra.mxu0 %v458
        %v1274 = vpop.f32.mrf.mxu0
        %v1275 = vadd.f32 %v941, %v1274
        %1276 = vmatmul.f32.gmra.mxu0 %v459
        %v1277 = vpop.f32.mrf.mxu0
        %v1278 = vadd.f32 %v941, %v1277
        %1279 = vmatmul.f32.gmra.mxu0 %v460
        %v1280 = vpop.f32.mrf.mxu0
        %v1281 = vadd.f32 %v941, %v1280
        %1282 = vmatmul.f32.gmra.mxu0 %v461
        %v1283 = vpop.f32.mrf.mxu0
        %v1284 = vadd.f32 %v941, %v1283
        %1285 = vmatmul.f32.gmra.mxu0 %v462
        %v1286 = vpop.f32.mrf.mxu0
        %v1287 = vadd.f32 %v941, %v1286
        %1288 = vmatmul.f32.gmra.mxu0 %v463
        %v1289 = vpop.f32.mrf.mxu0
        %v1290 = vadd.f32 %v941, %v1289
        %1291 = vdwg.mxu0
        %1292 = vmatpush.msra.mxu0 %v631
        %1293 = vmatpush.msra.mxu0 %v627
        %1294 = vmatpush.msra.mxu0 %v623
        %1295 = vmatpush.msra.mxu0 %v619
        %1296 = vmatpush.msra.mxu0 %v615
        %1297 = vmatpush.msra.mxu0 %v611
        %1298 = vmatpush.msra.mxu0 %v607
        %1299 = vmatpush.msra.mxu0 %v603
        %1300 = vmatpush.msra.mxu0 %v599
        %1301 = vmatpush.msra.mxu0 %v595
        %1302 = vmatpush.msra.mxu0 %v591
        %1303 = vmatpush.msra.mxu0 %v587
        %1304 = vmatpush.msra.mxu0 %v583
        %1305 = vmatpush.msra.mxu0 %v579
        %1306 = vmatpush.msra.mxu0 %v575
        %1307 = vmatpush.msra.mxu0 %v571
        %1308 = vmatmul.f32.gmra.mxu0 %v465
        %v1309 = vpop.f32.mrf.mxu0
        %v1310 = vadd.f32 %v1269, %v1309
        %1311 = vmatmul.f32.gmra.mxu0 %v466
        %v1312 = vpop.f32.mrf.mxu0
        %v1313 = vadd.f32 %v1272, %v1312
        %1314 = vmatmul.f32.gmra.mxu0 %v467
        %v1315 = vpop.f32.mrf.mxu0
        %v1316 = vadd.f32 %v1275, %v1315
        %1317 = vmatmul.f32.gmra.mxu0 %v468
        %v1318 = vpop.f32.mrf.mxu0
        %v1319 = vadd.f32 %v1278, %v1318
        %1320 = vmatmul.f32.gmra.mxu0 %v469
        %v1321 = vpop.f32.mrf.mxu0
        %v1322 = vadd.f32 %v1281, %v1321
        %1323 = vmatmul.f32.gmra.mxu0 %v470
        %v1324 = vpop.f32.mrf.mxu0
        %v1325 = vadd.f32 %v1284, %v1324
        %1326 = vmatmul.f32.gmra.mxu0 %v471
        %v1327 = vpop.f32.mrf.mxu0
        %v1328 = vadd.f32 %v1287, %v1327
        %1329 = vmatmul.f32.gmra.mxu0 %v472
        %v1330 = vpop.f32.mrf.mxu0
        %v1331 = vadd.f32 %v1290, %v1330
        %1332 = vdwg.mxu0
        %1333 = vmatpush.msra.mxu0 %v695
        %1334 = vmatpush.msra.mxu0 %v691
        %1335 = vmatpush.msra.mxu0 %v687
        %1336 = vmatpush.msra.mxu0 %v683
        %1337 = vmatpush.msra.mxu0 %v679
        %1338 = vmatpush.msra.mxu0 %v675
        %1339 = vmatpush.msra.mxu0 %v671
        %1340 = vmatpush.msra.mxu0 %v667
        %1341 = vmatpush.msra.mxu0 %v663
        %1342 = vmatpush.msra.mxu0 %v659
        %1343 = vmatpush.msra.mxu0 %v655
        %1344 = vmatpush.msra.mxu0 %v651
        %1345 = vmatpush.msra.mxu0 %v647
        %1346 = vmatpush.msra.mxu0 %v643
        %1347 = vmatpush.msra.mxu0 %v639
        %1348 = vmatpush.msra.mxu0 %v635
        %1349 = vmatmul.f32.gmra.mxu0 %v474
        %v1350 = vpop.f32.mrf.mxu0
        %v1351 = vadd.f32 %v1310, %v1350
        %1352 = vmatmul.f32.gmra.mxu0 %v475
        %v1353 = vpop.f32.mrf.mxu0
        %v1354 = vadd.f32 %v1313, %v1353
        %1355 = vmatmul.f32.gmra.mxu0 %v476
        %v1356 = vpop.f32.mrf.mxu0
        %v1357 = vadd.f32 %v1316, %v1356
        %1358 = vmatmul.f32.gmra.mxu0 %v477
        %v1359 = vpop.f32.mrf.mxu0
        %v1360 = vadd.f32 %v1319, %v1359
        %1361 = vmatmul.f32.gmra.mxu0 %v478
        %v1362 = vpop.f32.mrf.mxu0
        %v1363 = vadd.f32 %v1322, %v1362
        %1364 = vmatmul.f32.gmra.mxu0 %v479
        %v1365 = vpop.f32.mrf.mxu0
        %v1366 = vadd.f32 %v1325, %v1365
        %1367 = vmatmul.f32.gmra.mxu0 %v480
        %v1368 = vpop.f32.mrf.mxu0
        %v1369 = vadd.f32 %v1328, %v1368
        %1370 = vmatmul.f32.gmra.mxu0 %v481
        %v1371 = vpop.f32.mrf.mxu0
        %v1372 = vadd.f32 %v1331, %v1371
        %1373 = vdwg.mxu0
        %1374 = vmatpush.msra.mxu0 %v759
        %1375 = vmatpush.msra.mxu0 %v755
        %1376 = vmatpush.msra.mxu0 %v751
        %1377 = vmatpush.msra.mxu0 %v747
        %1378 = vmatpush.msra.mxu0 %v743
        %1379 = vmatpush.msra.mxu0 %v739
        %1380 = vmatpush.msra.mxu0 %v735
        %1381 = vmatpush.msra.mxu0 %v731
        %1382 = vmatpush.msra.mxu0 %v727
        %1383 = vmatpush.msra.mxu0 %v723
        %1384 = vmatpush.msra.mxu0 %v719
        %1385 = vmatpush.msra.mxu0 %v715
        %1386 = vmatpush.msra.mxu0 %v711
        %1387 = vmatpush.msra.mxu0 %v707
        %1388 = vmatpush.msra.mxu0 %v703
        %1389 = vmatpush.msra.mxu0 %v699
        %1390 = vmatmul.f32.gmra.mxu0 %v482
        %v1391 = vpop.f32.mrf.mxu0
        %v1392 = vadd.f32 %v1351, %v1391
        %1393 = vmatmul.f32.gmra.mxu0 %v483
        %v1394 = vpop.f32.mrf.mxu0
        %v1395 = vadd.f32 %v1354, %v1394
        %1396 = vmatmul.f32.gmra.mxu0 %v484
        %v1397 = vpop.f32.mrf.mxu0
        %v1398 = vadd.f32 %v1357, %v1397
        %1399 = vmatmul.f32.gmra.mxu0 %v485
        %v1400 = vpop.f32.mrf.mxu0
        %v1401 = vadd.f32 %v1360, %v1400
        %1402 = vmatmul.f32.gmra.mxu0 %v486
        %v1403 = vpop.f32.mrf.mxu0
        %v1404 = vadd.f32 %v1363, %v1403
        %1405 = vmatmul.f32.gmra.mxu0 %v487
        %v1406 = vpop.f32.mrf.mxu0
        %v1407 = vadd.f32 %v1366, %v1406
        %1408 = vmatmul.f32.gmra.mxu0 %v488
        %v1409 = vpop.f32.mrf.mxu0
        %v1410 = vadd.f32 %v1369, %v1409
        %1411 = vmatmul.f32.gmra.mxu0 %v489
        %v1412 = vpop.f32.mrf.mxu0
        %v1413 = vadd.f32 %v1372, %v1412
        %1414 = vdwg.mxu0
        %1415 = vmatpush.msra.mxu0 %v823
        %1416 = vmatpush.msra.mxu0 %v819
        %1417 = vmatpush.msra.mxu0 %v815
        %1418 = vmatpush.msra.mxu0 %v811
        %1419 = vmatpush.msra.mxu0 %v807
        %1420 = vmatpush.msra.mxu0 %v803
        %1421 = vmatpush.msra.mxu0 %v799
        %1422 = vmatpush.msra.mxu0 %v795
        %1423 = vmatpush.msra.mxu0 %v791
        %1424 = vmatpush.msra.mxu0 %v787
        %1425 = vmatpush.msra.mxu0 %v783
        %1426 = vmatpush.msra.mxu0 %v779
        %1427 = vmatpush.msra.mxu0 %v775
        %1428 = vmatpush.msra.mxu0 %v771
        %1429 = vmatpush.msra.mxu0 %v767
        %1430 = vmatpush.msra.mxu0 %v763
        %1431 = vmatmul.f32.gmra.mxu0 %v490
        %v1432 = vpop.f32.mrf.mxu0
        %v1433 = vadd.f32 %v1392, %v1432
        %1434 = vmatmul.f32.gmra.mxu0 %v491
        %v1435 = vpop.f32.mrf.mxu0
        %v1436 = vadd.f32 %v1395, %v1435
        %1437 = vmatmul.f32.gmra.mxu0 %v492
        %v1438 = vpop.f32.mrf.mxu0
        %v1439 = vadd.f32 %v1398, %v1438
        %1440 = vmatmul.f32.gmra.mxu0 %v493
        %v1441 = vpop.f32.mrf.mxu0
        %v1442 = vadd.f32 %v1401, %v1441
        %1443 = vmatmul.f32.gmra.mxu0 %v494
        %v1444 = vpop.f32.mrf.mxu0
        %v1445 = vadd.f32 %v1404, %v1444
        %1446 = vmatmul.f32.gmra.mxu0 %v495
        %v1447 = vpop.f32.mrf.mxu0
        %v1448 = vadd.f32 %v1407, %v1447
        %1449 = vmatmul.f32.gmra.mxu0 %v496
        %v1450 = vpop.f32.mrf.mxu0
        %v1451 = vadd.f32 %v1410, %v1450
        %1452 = vmatmul.f32.gmra.mxu0 %v497
        %v1453 = vpop.f32.mrf.mxu0
        %v1454 = vadd.f32 %v1413, %v1453
        %1455 = vdwg.mxu0
        %1456 = vmatpush.msra.mxu0 %v887
        %1457 = vmatpush.msra.mxu0 %v883
        %1458 = vmatpush.msra.mxu0 %v879
        %1459 = vmatpush.msra.mxu0 %v875
        %1460 = vmatpush.msra.mxu0 %v871
        %1461 = vmatpush.msra.mxu0 %v867
        %1462 = vmatpush.msra.mxu0 %v863
        %1463 = vmatpush.msra.mxu0 %v859
        %1464 = vmatpush.msra.mxu0 %v855
        %1465 = vmatpush.msra.mxu0 %v851
        %1466 = vmatpush.msra.mxu0 %v847
        %1467 = vmatpush.msra.mxu0 %v843
        %1468 = vmatpush.msra.mxu0 %v839
        %1469 = vmatpush.msra.mxu0 %v835
        %1470 = vmatpush.msra.mxu0 %v831
        %1471 = vmatpush.msra.mxu0 %v827
        %1472 = vmatmul.f32.gmra.mxu0 %v498
        %v1473 = vpop.f32.mrf.mxu0
        %v1474 = vadd.f32 %v1433, %v1473
        %1475 = vmatmul.f32.gmra.mxu0 %v499
        %v1476 = vpop.f32.mrf.mxu0
        %v1477 = vadd.f32 %v1436, %v1476
        %1478 = vmatmul.f32.gmra.mxu0 %v500
        %v1479 = vpop.f32.mrf.mxu0
        %v1480 = vadd.f32 %v1439, %v1479
        %1481 = vmatmul.f32.gmra.mxu0 %v501
        %v1482 = vpop.f32.mrf.mxu0
        %v1483 = vadd.f32 %v1442, %v1482
        %1484 = vmatmul.f32.gmra.mxu0 %v502
        %v1485 = vpop.f32.mrf.mxu0
        %v1486 = vadd.f32 %v1445, %v1485
        %1487 = vmatmul.f32.gmra.mxu0 %v503
        %v1488 = vpop.f32.mrf.mxu0
        %v1489 = vadd.f32 %v1448, %v1488
        %1490 = vmatmul.f32.gmra.mxu0 %v504
        %v1491 = vpop.f32.mrf.mxu0
        %v1492 = vadd.f32 %v1451, %v1491
        %1493 = vmatmul.f32.gmra.mxu0 %v505
        %v1494 = vpop.f32.mrf.mxu0
        %v1495 = vadd.f32 %v1454, %v1494
        %1496 = vdwg.mxu0
        %1497 = vmatpush.msra.mxu0 0.0
        %1498 = vmatpush.msra.mxu0 0.0
        %1499 = vmatpush.msra.mxu0 0.0
        %1500 = vmatpush.msra.mxu0 0.0
        %1501 = vmatpush.msra.mxu0 %v935
        %1502 = vmatpush.msra.mxu0 %v931
        %1503 = vmatpush.msra.mxu0 %v927
        %1504 = vmatpush.msra.mxu0 %v923
        %1505 = vmatpush.msra.mxu0 %v919
        %1506 = vmatpush.msra.mxu0 %v915
        %1507 = vmatpush.msra.mxu0 %v911
        %1508 = vmatpush.msra.mxu0 %v907
        %1509 = vmatpush.msra.mxu0 %v903
        %1510 = vmatpush.msra.mxu0 %v899
        %1511 = vmatpush.msra.mxu0 %v895
        %1512 = vmatpush.msra.mxu0 %v891
        %1513 = vmatmul.f32.gmra.mxu0 %v948
        %v1514 = vpop.f32.mrf.mxu0
        %v1515 = vadd.f32 %v1474, %v1514
        %1516 = vmatmul.f32.gmra.mxu0 %v950
        %v1517 = vpop.f32.mrf.mxu0
        %v1518 = vadd.f32 %v1477, %v1517
        %1519 = vmatmul.f32.gmra.mxu0 %v952
        %v1520 = vpop.f32.mrf.mxu0
        %v1521 = vadd.f32 %v1480, %v1520
        %1522 = vmatmul.f32.gmra.mxu0 %v954
        %v1523 = vpop.f32.mrf.mxu0
        %v1524 = vadd.f32 %v1483, %v1523
        %1525 = vmatmul.f32.gmra.mxu0 %v956
        %v1526 = vpop.f32.mrf.mxu0
        %v1527 = vadd.f32 %v1486, %v1526
        %1528 = vmatmul.f32.gmra.mxu0 %v958
        %v1529 = vpop.f32.mrf.mxu0
        %v1530 = vadd.f32 %v1489, %v1529
        %1531 = vmatmul.f32.gmra.mxu0 %v960
        %v1532 = vpop.f32.mrf.mxu0
        %v1533 = vadd.f32 %v1492, %v1532
        %1534 = vmatmul.f32.gmra.mxu0 %v962
        %v1535 = vpop.f32.mrf.mxu0
        %v1536 = vadd.f32 %v1495, %v1535
        %1537 = vdwg.mxu0
        %1538 = vmatpush.msra.mxu0 %v568
        %1539 = vmatpush.msra.mxu0 %v564
        %1540 = vmatpush.msra.mxu0 %v560
        %1541 = vmatpush.msra.mxu0 %v556
        %1542 = vmatpush.msra.mxu0 %v552
        %1543 = vmatpush.msra.mxu0 %v548
        %1544 = vmatpush.msra.mxu0 %v544
        %1545 = vmatpush.msra.mxu0 %v540
        %1546 = vmatpush.msra.mxu0 %v536
        %1547 = vmatpush.msra.mxu0 %v532
        %1548 = vmatpush.msra.mxu0 %v528
        %1549 = vmatpush.msra.mxu0 %v524
        %1550 = vmatpush.msra.mxu0 %v520
        %1551 = vmatpush.msra.mxu0 %v516
        %1552 = vmatpush.msra.mxu0 %v512
        %1553 = vmatpush.msra.mxu0 %v508
        %1554 = vmatmul.f32.gmra.mxu0 %v456
        %v1555 = vpop.f32.mrf.mxu0
        %v1556 = vadd.f32 %v942, %v1555
        %1557 = vmatmul.f32.gmra.mxu0 %v457
        %v1558 = vpop.f32.mrf.mxu0
        %v1559 = vadd.f32 %v942, %v1558
        %1560 = vmatmul.f32.gmra.mxu0 %v458
        %v1561 = vpop.f32.mrf.mxu0
        %v1562 = vadd.f32 %v942, %v1561
        %1563 = vmatmul.f32.gmra.mxu0 %v459
        %v1564 = vpop.f32.mrf.mxu0
        %v1565 = vadd.f32 %v942, %v1564
        %1566 = vmatmul.f32.gmra.mxu0 %v460
        %v1567 = vpop.f32.mrf.mxu0
        %v1568 = vadd.f32 %v942, %v1567
        %1569 = vmatmul.f32.gmra.mxu0 %v461
        %v1570 = vpop.f32.mrf.mxu0
        %v1571 = vadd.f32 %v942, %v1570
        %1572 = vmatmul.f32.gmra.mxu0 %v462
        %v1573 = vpop.f32.mrf.mxu0
        %v1574 = vadd.f32 %v942, %v1573
        %1575 = vmatmul.f32.gmra.mxu0 %v463
        %v1576 = vpop.f32.mrf.mxu0
        %v1577 = vadd.f32 %v942, %v1576
        %1578 = vdwg.mxu0
        %1579 = vmatpush.msra.mxu0 %v632
        %1580 = vmatpush.msra.mxu0 %v628
        %1581 = vmatpush.msra.mxu0 %v624
        %1582 = vmatpush.msra.mxu0 %v620
        %1583 = vmatpush.msra.mxu0 %v616
        %1584 = vmatpush.msra.mxu0 %v612
        %1585 = vmatpush.msra.mxu0 %v608
        %1586 = vmatpush.msra.mxu0 %v604
        %1587 = vmatpush.msra.mxu0 %v600
        %1588 = vmatpush.msra.mxu0 %v596
        %1589 = vmatpush.msra.mxu0 %v592
        %1590 = vmatpush.msra.mxu0 %v588
        %1591 = vmatpush.msra.mxu0 %v584
        %1592 = vmatpush.msra.mxu0 %v580
        %1593 = vmatpush.msra.mxu0 %v576
        %1594 = vmatpush.msra.mxu0 %v572
        %1595 = vmatmul.f32.gmra.mxu0 %v465
        %v1596 = vpop.f32.mrf.mxu0
        %v1597 = vadd.f32 %v1556, %v1596
        %1598 = vmatmul.f32.gmra.mxu0 %v466
        %v1599 = vpop.f32.mrf.mxu0
        %v1600 = vadd.f32 %v1559, %v1599
        %1601 = vmatmul.f32.gmra.mxu0 %v467
        %v1602 = vpop.f32.mrf.mxu0
        %v1603 = vadd.f32 %v1562, %v1602
        %1604 = vmatmul.f32.gmra.mxu0 %v468
        %v1605 = vpop.f32.mrf.mxu0
        %v1606 = vadd.f32 %v1565, %v1605
        %1607 = vmatmul.f32.gmra.mxu0 %v469
        %v1608 = vpop.f32.mrf.mxu0
        %v1609 = vadd.f32 %v1568, %v1608
        %1610 = vmatmul.f32.gmra.mxu0 %v470
        %v1611 = vpop.f32.mrf.mxu0
        %v1612 = vadd.f32 %v1571, %v1611
        %1613 = vmatmul.f32.gmra.mxu0 %v471
        %v1614 = vpop.f32.mrf.mxu0
        %v1615 = vadd.f32 %v1574, %v1614
        %1616 = vmatmul.f32.gmra.mxu0 %v472
        %v1617 = vpop.f32.mrf.mxu0
        %v1618 = vadd.f32 %v1577, %v1617
        %1619 = vdwg.mxu0
        %1620 = vmatpush.msra.mxu0 %v696
        %1621 = vmatpush.msra.mxu0 %v692
        %1622 = vmatpush.msra.mxu0 %v688
        %1623 = vmatpush.msra.mxu0 %v684
        %1624 = vmatpush.msra.mxu0 %v680
        %1625 = vmatpush.msra.mxu0 %v676
        %1626 = vmatpush.msra.mxu0 %v672
        %1627 = vmatpush.msra.mxu0 %v668
        %1628 = vmatpush.msra.mxu0 %v664
        %1629 = vmatpush.msra.mxu0 %v660
        %1630 = vmatpush.msra.mxu0 %v656
        %1631 = vmatpush.msra.mxu0 %v652
        %1632 = vmatpush.msra.mxu0 %v648
        %1633 = vmatpush.msra.mxu0 %v644
        %1634 = vmatpush.msra.mxu0 %v640
        %1635 = vmatpush.msra.mxu0 %v636
        %1636 = vmatmul.f32.gmra.mxu0 %v474
        %v1637 = vpop.f32.mrf.mxu0
        %v1638 = vadd.f32 %v1597, %v1637
        %1639 = vmatmul.f32.gmra.mxu0 %v475
        %v1640 = vpop.f32.mrf.mxu0
        %v1641 = vadd.f32 %v1600, %v1640
        %1642 = vmatmul.f32.gmra.mxu0 %v476
        %v1643 = vpop.f32.mrf.mxu0
        %v1644 = vadd.f32 %v1603, %v1643
        %1645 = vmatmul.f32.gmra.mxu0 %v477
        %v1646 = vpop.f32.mrf.mxu0
        %v1647 = vadd.f32 %v1606, %v1646
        %1648 = vmatmul.f32.gmra.mxu0 %v478
        %v1649 = vpop.f32.mrf.mxu0
        %v1650 = vadd.f32 %v1609, %v1649
        %1651 = vmatmul.f32.gmra.mxu0 %v479
        %v1652 = vpop.f32.mrf.mxu0
        %v1653 = vadd.f32 %v1612, %v1652
        %1654 = vmatmul.f32.gmra.mxu0 %v480
        %v1655 = vpop.f32.mrf.mxu0
        %v1656 = vadd.f32 %v1615, %v1655
        %1657 = vmatmul.f32.gmra.mxu0 %v481
        %v1658 = vpop.f32.mrf.mxu0
        %v1659 = vadd.f32 %v1618, %v1658
        %1660 = vdwg.mxu0
        %1661 = vmatpush.msra.mxu0 %v760
        %1662 = vmatpush.msra.mxu0 %v756
        %1663 = vmatpush.msra.mxu0 %v752
        %1664 = vmatpush.msra.mxu0 %v748
        %1665 = vmatpush.msra.mxu0 %v744
        %1666 = vmatpush.msra.mxu0 %v740
        %1667 = vmatpush.msra.mxu0 %v736
        %1668 = vmatpush.msra.mxu0 %v732
        %1669 = vmatpush.msra.mxu0 %v728
        %1670 = vmatpush.msra.mxu0 %v724
        %1671 = vmatpush.msra.mxu0 %v720
        %1672 = vmatpush.msra.mxu0 %v716
        %1673 = vmatpush.msra.mxu0 %v712
        %1674 = vmatpush.msra.mxu0 %v708
        %1675 = vmatpush.msra.mxu0 %v704
        %1676 = vmatpush.msra.mxu0 %v700
        %1677 = vmatmul.f32.gmra.mxu0 %v482
        %v1678 = vpop.f32.mrf.mxu0
        %v1679 = vadd.f32 %v1638, %v1678
        %1680 = vmatmul.f32.gmra.mxu0 %v483
        %v1681 = vpop.f32.mrf.mxu0
        %v1682 = vadd.f32 %v1641, %v1681
        %1683 = vmatmul.f32.gmra.mxu0 %v484
        %v1684 = vpop.f32.mrf.mxu0
        %v1685 = vadd.f32 %v1644, %v1684
        %1686 = vmatmul.f32.gmra.mxu0 %v485
        %v1687 = vpop.f32.mrf.mxu0
        %v1688 = vadd.f32 %v1647, %v1687
        %1689 = vmatmul.f32.gmra.mxu0 %v486
        %v1690 = vpop.f32.mrf.mxu0
        %v1691 = vadd.f32 %v1650, %v1690
        %1692 = vmatmul.f32.gmra.mxu0 %v487
        %v1693 = vpop.f32.mrf.mxu0
        %v1694 = vadd.f32 %v1653, %v1693
        %1695 = vmatmul.f32.gmra.mxu0 %v488
        %v1696 = vpop.f32.mrf.mxu0
        %v1697 = vadd.f32 %v1656, %v1696
        %1698 = vmatmul.f32.gmra.mxu0 %v489
        %v1699 = vpop.f32.mrf.mxu0
        %v1700 = vadd.f32 %v1659, %v1699
        %1701 = vdwg.mxu0
        %1702 = vmatpush.msra.mxu0 %v824
        %1703 = vmatpush.msra.mxu0 %v820
        %1704 = vmatpush.msra.mxu0 %v816
        %1705 = vmatpush.msra.mxu0 %v812
        %1706 = vmatpush.msra.mxu0 %v808
        %1707 = vmatpush.msra.mxu0 %v804
        %1708 = vmatpush.msra.mxu0 %v800
        %1709 = vmatpush.msra.mxu0 %v796
        %1710 = vmatpush.msra.mxu0 %v792
        %1711 = vmatpush.msra.mxu0 %v788
        %1712 = vmatpush.msra.mxu0 %v784
        %1713 = vmatpush.msra.mxu0 %v780
        %1714 = vmatpush.msra.mxu0 %v776
        %1715 = vmatpush.msra.mxu0 %v772
        %1716 = vmatpush.msra.mxu0 %v768
        %1717 = vmatpush.msra.mxu0 %v764
        %1718 = vmatmul.f32.gmra.mxu0 %v490
        %v1719 = vpop.f32.mrf.mxu0
        %v1720 = vadd.f32 %v1679, %v1719
        %1721 = vmatmul.f32.gmra.mxu0 %v491
        %v1722 = vpop.f32.mrf.mxu0
        %v1723 = vadd.f32 %v1682, %v1722
        %1724 = vmatmul.f32.gmra.mxu0 %v492
        %v1725 = vpop.f32.mrf.mxu0
        %v1726 = vadd.f32 %v1685, %v1725
        %1727 = vmatmul.f32.gmra.mxu0 %v493
        %v1728 = vpop.f32.mrf.mxu0
        %v1729 = vadd.f32 %v1688, %v1728
        %1730 = vmatmul.f32.gmra.mxu0 %v494
        %v1731 = vpop.f32.mrf.mxu0
        %v1732 = vadd.f32 %v1691, %v1731
        %1733 = vmatmul.f32.gmra.mxu0 %v495
        %v1734 = vpop.f32.mrf.mxu0
        %v1735 = vadd.f32 %v1694, %v1734
        %1736 = vmatmul.f32.gmra.mxu0 %v496
        %v1737 = vpop.f32.mrf.mxu0
        %v1738 = vadd.f32 %v1697, %v1737
        %1739 = vmatmul.f32.gmra.mxu0 %v497
        %v1740 = vpop.f32.mrf.mxu0
        %v1741 = vadd.f32 %v1700, %v1740
        %1742 = vdwg.mxu0
        %1743 = vmatpush.msra.mxu0 %v888
        %1744 = vmatpush.msra.mxu0 %v884
        %1745 = vmatpush.msra.mxu0 %v880
        %1746 = vmatpush.msra.mxu0 %v876
        %1747 = vmatpush.msra.mxu0 %v872
        %1748 = vmatpush.msra.mxu0 %v868
        %1749 = vmatpush.msra.mxu0 %v864
        %1750 = vmatpush.msra.mxu0 %v860
        %1751 = vmatpush.msra.mxu0 %v856
        %1752 = vmatpush.msra.mxu0 %v852
        %1753 = vmatpush.msra.mxu0 %v848
        %1754 = vmatpush.msra.mxu0 %v844
        %1755 = vmatpush.msra.mxu0 %v840
        %1756 = vmatpush.msra.mxu0 %v836
        %1757 = vmatpush.msra.mxu0 %v832
        %1758 = vmatpush.msra.mxu0 %v828
        %1759 = vmatmul.f32.gmra.mxu0 %v498
        %v1760 = vpop.f32.mrf.mxu0
        %v1761 = vadd.f32 %v1720, %v1760
        %1762 = vmatmul.f32.gmra.mxu0 %v499
        %v1763 = vpop.f32.mrf.mxu0
        %v1764 = vadd.f32 %v1723, %v1763
        %1765 = vmatmul.f32.gmra.mxu0 %v500
        %v1766 = vpop.f32.mrf.mxu0
        %v1767 = vadd.f32 %v1726, %v1766
        %1768 = vmatmul.f32.gmra.mxu0 %v501
        %v1769 = vpop.f32.mrf.mxu0
        %v1770 = vadd.f32 %v1729, %v1769
        %1771 = vmatmul.f32.gmra.mxu0 %v502
        %v1772 = vpop.f32.mrf.mxu0
        %v1773 = vadd.f32 %v1732, %v1772
        %1774 = vmatmul.f32.gmra.mxu0 %v503
        %v1775 = vpop.f32.mrf.mxu0
        %v1776 = vadd.f32 %v1735, %v1775
        %1777 = vmatmul.f32.gmra.mxu0 %v504
        %v1778 = vpop.f32.mrf.mxu0
        %v1779 = vadd.f32 %v1738, %v1778
        %1780 = vmatmul.f32.gmra.mxu0 %v505
        %v1781 = vpop.f32.mrf.mxu0
        %v1782 = vadd.f32 %v1741, %v1781
        %1783 = vdwg.mxu0
        %1784 = vmatpush.msra.mxu0 0.0
        %1785 = vmatpush.msra.mxu0 0.0
        %1786 = vmatpush.msra.mxu0 0.0
        %1787 = vmatpush.msra.mxu0 0.0
        %1788 = vmatpush.msra.mxu0 %v936
        %1789 = vmatpush.msra.mxu0 %v932
        %1790 = vmatpush.msra.mxu0 %v928
        %1791 = vmatpush.msra.mxu0 %v924
        %1792 = vmatpush.msra.mxu0 %v920
        %1793 = vmatpush.msra.mxu0 %v916
        %1794 = vmatpush.msra.mxu0 %v912
        %1795 = vmatpush.msra.mxu0 %v908
        %1796 = vmatpush.msra.mxu0 %v904
        %1797 = vmatpush.msra.mxu0 %v900
        %1798 = vmatpush.msra.mxu0 %v896
        %1799 = vmatpush.msra.mxu0 %v892
        %1800 = vmatmul.f32.gmra.mxu0 %v948
        %v1801 = vpop.f32.mrf.mxu0
        %v1802 = vadd.f32 %v1761, %v1801
        %1803 = vmatmul.f32.gmra.mxu0 %v950
        %v1804 = vpop.f32.mrf.mxu0
        %v1805 = vadd.f32 %v1764, %v1804
        %1806 = vmatmul.f32.gmra.mxu0 %v952
        %v1807 = vpop.f32.mrf.mxu0
        %v1808 = vadd.f32 %v1767, %v1807
        %1809 = vmatmul.f32.gmra.mxu0 %v954
        %v1810 = vpop.f32.mrf.mxu0
        %v1811 = vadd.f32 %v1770, %v1810
        %1812 = vmatmul.f32.gmra.mxu0 %v956
        %v1813 = vpop.f32.mrf.mxu0
        %v1814 = vadd.f32 %v1773, %v1813
        %1815 = vmatmul.f32.gmra.mxu0 %v958
        %v1816 = vpop.f32.mrf.mxu0
        %v1817 = vadd.f32 %v1776, %v1816
        %1818 = vmatmul.f32.gmra.mxu0 %v960
        %v1819 = vpop.f32.mrf.mxu0
        %v1820 = vadd.f32 %v1779, %v1819
        %1821 = vmatmul.f32.gmra.mxu0 %v962
        %v1822 = vpop.f32.mrf.mxu0
        %v1823 = vadd.f32 %v1782, %v1822
        %1824 = vdwg.mxu0
        %1825 = vmatpush.msra.mxu0 %v569
        %1826 = vmatpush.msra.mxu0 %v565
        %1827 = vmatpush.msra.mxu0 %v561
        %1828 = vmatpush.msra.mxu0 %v557
        %1829 = vmatpush.msra.mxu0 %v553
        %1830 = vmatpush.msra.mxu0 %v549
        %1831 = vmatpush.msra.mxu0 %v545
        %1832 = vmatpush.msra.mxu0 %v541
        %1833 = vmatpush.msra.mxu0 %v537
        %1834 = vmatpush.msra.mxu0 %v533
        %1835 = vmatpush.msra.mxu0 %v529
        %1836 = vmatpush.msra.mxu0 %v525
        %1837 = vmatpush.msra.mxu0 %v521
        %1838 = vmatpush.msra.mxu0 %v517
        %1839 = vmatpush.msra.mxu0 %v513
        %1840 = vmatpush.msra.mxu0 %v509
        %1841 = vmatmul.f32.gmra.mxu0 %v456
        %v1842 = vpop.f32.mrf.mxu0
        %v1843 = vadd.f32 %v943, %v1842
        %1844 = vmatmul.f32.gmra.mxu0 %v457
        %v1845 = vpop.f32.mrf.mxu0
        %v1846 = vadd.f32 %v943, %v1845
        %1847 = vmatmul.f32.gmra.mxu0 %v458
        %v1848 = vpop.f32.mrf.mxu0
        %v1849 = vadd.f32 %v943, %v1848
        %1850 = vmatmul.f32.gmra.mxu0 %v459
        %v1851 = vpop.f32.mrf.mxu0
        %v1852 = vadd.f32 %v943, %v1851
        %1853 = vmatmul.f32.gmra.mxu0 %v460
        %v1854 = vpop.f32.mrf.mxu0
        %v1855 = vadd.f32 %v943, %v1854
        %1856 = vmatmul.f32.gmra.mxu0 %v461
        %v1857 = vpop.f32.mrf.mxu0
        %v1858 = vadd.f32 %v943, %v1857
        %1859 = vmatmul.f32.gmra.mxu0 %v462
        %v1860 = vpop.f32.mrf.mxu0
        %v1861 = vadd.f32 %v943, %v1860
        %1862 = vmatmul.f32.gmra.mxu0 %v463
        %v1863 = vpop.f32.mrf.mxu0
        %v1864 = vadd.f32 %v943, %v1863
        %1865 = vdwg.mxu0
        %1866 = vmatpush.msra.mxu0 %v633
        %1867 = vmatpush.msra.mxu0 %v629
        %1868 = vmatpush.msra.mxu0 %v625
        %1869 = vmatpush.msra.mxu0 %v621
        %1870 = vmatpush.msra.mxu0 %v617
        %1871 = vmatpush.msra.mxu0 %v613
        %1872 = vmatpush.msra.mxu0 %v609
        %1873 = vmatpush.msra.mxu0 %v605
        %1874 = vmatpush.msra.mxu0 %v601
        %1875 = vmatpush.msra.mxu0 %v597
        %1876 = vmatpush.msra.mxu0 %v593
        %1877 = vmatpush.msra.mxu0 %v589
        %1878 = vmatpush.msra.mxu0 %v585
        %1879 = vmatpush.msra.mxu0 %v581
        %1880 = vmatpush.msra.mxu0 %v577
        %1881 = vmatpush.msra.mxu0 %v573
        %1882 = vmatmul.f32.gmra.mxu0 %v465
        %v1883 = vpop.f32.mrf.mxu0
        %v1884 = vadd.f32 %v1843, %v1883
        %1885 = vmatmul.f32.gmra.mxu0 %v466
        %v1886 = vpop.f32.mrf.mxu0
        %v1887 = vadd.f32 %v1846, %v1886
        %1888 = vmatmul.f32.gmra.mxu0 %v467
        %v1889 = vpop.f32.mrf.mxu0
        %v1890 = vadd.f32 %v1849, %v1889
        %1891 = vmatmul.f32.gmra.mxu0 %v468
        %v1892 = vpop.f32.mrf.mxu0
        %v1893 = vadd.f32 %v1852, %v1892
        %1894 = vmatmul.f32.gmra.mxu0 %v469
        %v1895 = vpop.f32.mrf.mxu0
        %v1896 = vadd.f32 %v1855, %v1895
        %1897 = vmatmul.f32.gmra.mxu0 %v470
        %v1898 = vpop.f32.mrf.mxu0
        %v1899 = vadd.f32 %v1858, %v1898
        %1900 = vmatmul.f32.gmra.mxu0 %v471
        %v1901 = vpop.f32.mrf.mxu0
        %v1902 = vadd.f32 %v1861, %v1901
        %1903 = vmatmul.f32.gmra.mxu0 %v472
        %v1904 = vpop.f32.mrf.mxu0
        %v1905 = vadd.f32 %v1864, %v1904
        %1906 = vdwg.mxu0
        %1907 = vmatpush.msra.mxu0 %v697
        %1908 = vmatpush.msra.mxu0 %v693
        %1909 = vmatpush.msra.mxu0 %v689
        %1910 = vmatpush.msra.mxu0 %v685
        %1911 = vmatpush.msra.mxu0 %v681
        %1912 = vmatpush.msra.mxu0 %v677
        %1913 = vmatpush.msra.mxu0 %v673
        %1914 = vmatpush.msra.mxu0 %v669
        %1915 = vmatpush.msra.mxu0 %v665
        %1916 = vmatpush.msra.mxu0 %v661
        %1917 = vmatpush.msra.mxu0 %v657
        %1918 = vmatpush.msra.mxu0 %v653
        %1919 = vmatpush.msra.mxu0 %v649
        %1920 = vmatpush.msra.mxu0 %v645
        %1921 = vmatpush.msra.mxu0 %v641
        %1922 = vmatpush.msra.mxu0 %v637
        %1923 = vmatmul.f32.gmra.mxu0 %v474
        %v1924 = vpop.f32.mrf.mxu0
        %v1925 = vadd.f32 %v1884, %v1924
        %1926 = vmatmul.f32.gmra.mxu0 %v475
        %v1927 = vpop.f32.mrf.mxu0
        %v1928 = vadd.f32 %v1887, %v1927
        %1929 = vmatmul.f32.gmra.mxu0 %v476
        %v1930 = vpop.f32.mrf.mxu0
        %v1931 = vadd.f32 %v1890, %v1930
        %1932 = vmatmul.f32.gmra.mxu0 %v477
        %v1933 = vpop.f32.mrf.mxu0
        %v1934 = vadd.f32 %v1893, %v1933
        %1935 = vmatmul.f32.gmra.mxu0 %v478
        %v1936 = vpop.f32.mrf.mxu0
        %v1937 = vadd.f32 %v1896, %v1936
        %1938 = vmatmul.f32.gmra.mxu0 %v479
        %v1939 = vpop.f32.mrf.mxu0
        %v1940 = vadd.f32 %v1899, %v1939
        %1941 = vmatmul.f32.gmra.mxu0 %v480
        %v1942 = vpop.f32.mrf.mxu0
        %v1943 = vadd.f32 %v1902, %v1942
        %1944 = vmatmul.f32.gmra.mxu0 %v481
        %v1945 = vpop.f32.mrf.mxu0
        %v1946 = vadd.f32 %v1905, %v1945
        %1947 = vdwg.mxu0
        %1948 = vmatpush.msra.mxu0 %v761
        %1949 = vmatpush.msra.mxu0 %v757
        %1950 = vmatpush.msra.mxu0 %v753
        %1951 = vmatpush.msra.mxu0 %v749
        %1952 = vmatpush.msra.mxu0 %v745
        %1953 = vmatpush.msra.mxu0 %v741
        %1954 = vmatpush.msra.mxu0 %v737
        %1955 = vmatpush.msra.mxu0 %v733
        %1956 = vmatpush.msra.mxu0 %v729
        %1957 = vmatpush.msra.mxu0 %v725
        %1958 = vmatpush.msra.mxu0 %v721
        %1959 = vmatpush.msra.mxu0 %v717
        %1960 = vmatpush.msra.mxu0 %v713
        %1961 = vmatpush.msra.mxu0 %v709
        %1962 = vmatpush.msra.mxu0 %v705
        %1963 = vmatpush.msra.mxu0 %v701
        %1964 = vmatmul.f32.gmra.mxu0 %v482
        %v1965 = vpop.f32.mrf.mxu0
        %v1966 = vadd.f32 %v1925, %v1965
        %1967 = vmatmul.f32.gmra.mxu0 %v483
        %v1968 = vpop.f32.mrf.mxu0
        %v1969 = vadd.f32 %v1928, %v1968
        %1970 = vmatmul.f32.gmra.mxu0 %v484
        %v1971 = vpop.f32.mrf.mxu0
        %v1972 = vadd.f32 %v1931, %v1971
        %1973 = vmatmul.f32.gmra.mxu0 %v485
        %v1974 = vpop.f32.mrf.mxu0
        %v1975 = vadd.f32 %v1934, %v1974
        %1976 = vmatmul.f32.gmra.mxu0 %v486
        %v1977 = vpop.f32.mrf.mxu0
        %v1978 = vadd.f32 %v1937, %v1977
        %1979 = vmatmul.f32.gmra.mxu0 %v487
        %v1980 = vpop.f32.mrf.mxu0
        %v1981 = vadd.f32 %v1940, %v1980
        %1982 = vmatmul.f32.gmra.mxu0 %v488
        %v1983 = vpop.f32.mrf.mxu0
        %v1984 = vadd.f32 %v1943, %v1983
        %1985 = vmatmul.f32.gmra.mxu0 %v489
        %v1986 = vpop.f32.mrf.mxu0
        %v1987 = vadd.f32 %v1946, %v1986
        %1988 = vdwg.mxu0
        %1989 = vmatpush.msra.mxu0 %v825
        %1990 = vmatpush.msra.mxu0 %v821
        %1991 = vmatpush.msra.mxu0 %v817
        %1992 = vmatpush.msra.mxu0 %v813
        %1993 = vmatpush.msra.mxu0 %v809
        %1994 = vmatpush.msra.mxu0 %v805
        %1995 = vmatpush.msra.mxu0 %v801
        %1996 = vmatpush.msra.mxu0 %v797
        %1997 = vmatpush.msra.mxu0 %v793
        %1998 = vmatpush.msra.mxu0 %v789
        %1999 = vmatpush.msra.mxu0 %v785
        %2000 = vmatpush.msra.mxu0 %v781
        %2001 = vmatpush.msra.mxu0 %v777
        %2002 = vmatpush.msra.mxu0 %v773
        %2003 = vmatpush.msra.mxu0 %v769
        %2004 = vmatpush.msra.mxu0 %v765
        %2005 = vmatmul.f32.gmra.mxu0 %v490
        %v2006 = vpop.f32.mrf.mxu0
        %v2007 = vadd.f32 %v1966, %v2006
        %2008 = vmatmul.f32.gmra.mxu0 %v491
        %v2009 = vpop.f32.mrf.mxu0
        %v2010 = vadd.f32 %v1969, %v2009
        %2011 = vmatmul.f32.gmra.mxu0 %v492
        %v2012 = vpop.f32.mrf.mxu0
        %v2013 = vadd.f32 %v1972, %v2012
        %2014 = vmatmul.f32.gmra.mxu0 %v493
        %v2015 = vpop.f32.mrf.mxu0
        %v2016 = vadd.f32 %v1975, %v2015
        %2017 = vmatmul.f32.gmra.mxu0 %v494
        %v2018 = vpop.f32.mrf.mxu0
        %v2019 = vadd.f32 %v1978, %v2018
        %2020 = vmatmul.f32.gmra.mxu0 %v495
        %v2021 = vpop.f32.mrf.mxu0
        %v2022 = vadd.f32 %v1981, %v2021
        %2023 = vmatmul.f32.gmra.mxu0 %v496
        %v2024 = vpop.f32.mrf.mxu0
        %v2025 = vadd.f32 %v1984, %v2024
        %2026 = vmatmul.f32.gmra.mxu0 %v497
        %v2027 = vpop.f32.mrf.mxu0
        %v2028 = vadd.f32 %v1987, %v2027
        %2029 = vdwg.mxu0
        %2030 = vmatpush.msra.mxu0 %v889
        %2031 = vmatpush.msra.mxu0 %v885
        %2032 = vmatpush.msra.mxu0 %v881
        %2033 = vmatpush.msra.mxu0 %v877
        %2034 = vmatpush.msra.mxu0 %v873
        %2035 = vmatpush.msra.mxu0 %v869
        %2036 = vmatpush.msra.mxu0 %v865
        %2037 = vmatpush.msra.mxu0 %v861
        %2038 = vmatpush.msra.mxu0 %v857
        %2039 = vmatpush.msra.mxu0 %v853
        %2040 = vmatpush.msra.mxu0 %v849
        %2041 = vmatpush.msra.mxu0 %v845
        %2042 = vmatpush.msra.mxu0 %v841
        %2043 = vmatpush.msra.mxu0 %v837
        %2044 = vmatpush.msra.mxu0 %v833
        %2045 = vmatpush.msra.mxu0 %v829
        %2046 = vmatmul.f32.gmra.mxu0 %v498
        %v2047 = vpop.f32.mrf.mxu0
        %v2048 = vadd.f32 %v2007, %v2047
        %2049 = vmatmul.f32.gmra.mxu0 %v499
        %v2050 = vpop.f32.mrf.mxu0
        %v2051 = vadd.f32 %v2010, %v2050
        %2052 = vmatmul.f32.gmra.mxu0 %v500
        %v2053 = vpop.f32.mrf.mxu0
        %v2054 = vadd.f32 %v2013, %v2053
        %2055 = vmatmul.f32.gmra.mxu0 %v501
        %v2056 = vpop.f32.mrf.mxu0
        %v2057 = vadd.f32 %v2016, %v2056
        %2058 = vmatmul.f32.gmra.mxu0 %v502
        %v2059 = vpop.f32.mrf.mxu0
        %v2060 = vadd.f32 %v2019, %v2059
        %2061 = vmatmul.f32.gmra.mxu0 %v503
        %v2062 = vpop.f32.mrf.mxu0
        %v2063 = vadd.f32 %v2022, %v2062
        %2064 = vmatmul.f32.gmra.mxu0 %v504
        %v2065 = vpop.f32.mrf.mxu0
        %v2066 = vadd.f32 %v2025, %v2065
        %2067 = vmatmul.f32.gmra.mxu0 %v505
        %v2068 = vpop.f32.mrf.mxu0
        %v2069 = vadd.f32 %v2028, %v2068
        %2070 = vdwg.mxu0
        %2071 = vmatpush.msra.mxu0 0.0
        %2072 = vmatpush.msra.mxu0 0.0
        %2073 = vmatpush.msra.mxu0 0.0
        %2074 = vmatpush.msra.mxu0 0.0
        %2075 = vmatpush.msra.mxu0 %v937
        %2076 = vmatpush.msra.mxu0 %v933
        %2077 = vmatpush.msra.mxu0 %v929
        %2078 = vmatpush.msra.mxu0 %v925
        %2079 = vmatpush.msra.mxu0 %v921
        %2080 = vmatpush.msra.mxu0 %v917
        %2081 = vmatpush.msra.mxu0 %v913
        %2082 = vmatpush.msra.mxu0 %v909
        %2083 = vmatpush.msra.mxu0 %v905
        %2084 = vmatpush.msra.mxu0 %v901
        %2085 = vmatpush.msra.mxu0 %v897
        %2086 = vmatpush.msra.mxu0 %v893
        %2087 = vmatmul.f32.gmra.mxu0 %v948
        %v2088 = vpop.f32.mrf.mxu0
        %v2089 = vadd.f32 %v2048, %v2088
        %2090 = vmatmul.f32.gmra.mxu0 %v950
        %v2091 = vpop.f32.mrf.mxu0
        %v2092 = vadd.f32 %v2051, %v2091
        %2093 = vmatmul.f32.gmra.mxu0 %v952
        %v2094 = vpop.f32.mrf.mxu0
        %v2095 = vadd.f32 %v2054, %v2094
        %2096 = vmatmul.f32.gmra.mxu0 %v954
        %v2097 = vpop.f32.mrf.mxu0
        %v2098 = vadd.f32 %v2057, %v2097
        %2099 = vmatmul.f32.gmra.mxu0 %v956
        %v2100 = vpop.f32.mrf.mxu0
        %v2101 = vadd.f32 %v2060, %v2100
        %2102 = vmatmul.f32.gmra.mxu0 %v958
        %v2103 = vpop.f32.mrf.mxu0
        %v2104 = vadd.f32 %v2063, %v2103
        %2105 = vmatmul.f32.gmra.mxu0 %v960
        %v2106 = vpop.f32.mrf.mxu0
        %v2107 = vadd.f32 %v2066, %v2106
        %2108 = vmatmul.f32.gmra.mxu0 %v962
        %v2109 = vpop.f32.mrf.mxu0
        %v2110 = vadd.f32 %v2069, %v2109
        %2111 = vdwg.mxu0
        %v2112 = vpack.c.bf16 %v1515, %v1228
        %v2113 = vpack.c.bf16 %v2089, %v1802
        %v2114 = vpack.c.bf16 %v1518, %v1231
        %v2115 = vpack.c.bf16 %v2092, %v1805
        %v2116 = vpack.c.bf16 %v1521, %v1234
        %v2117 = vpack.c.bf16 %v2095, %v1808
        %v2118 = vpack.c.bf16 %v1524, %v1237
        %v2119 = vpack.c.bf16 %v2098, %v1811
        %v2120 = vpack.c.bf16 %v1527, %v1240
        %v2121 = vpack.c.bf16 %v2101, %v1814
        %v2122 = vpack.c.bf16 %v1530, %v1243
        %v2123 = vpack.c.bf16 %v2104, %v1817
        %v2124 = vpack.c.bf16 %v1533, %v1246
        %v2125 = vpack.c.bf16 %v2107, %v1820
        %v2126 = vpack.c.bf16 %v1536, %v1249
        %v2127 = vpack.c.bf16 %v2110, %v1823
        %2128 = vst [vmem:[%s195] sm:$0xff] %v2112
        %2129 = vst [vmem:[%s195 + $0x8] sm:$0xff] %v2113
        %2130 = vst [vmem:[%s195 + $0x10] sm:$0xff] %v2114
        %2131 = vst [vmem:[%s195 + $0x18] sm:$0xff] %v2115
        %2132 = vst [vmem:[%s195 + $0x20] sm:$0xff] %v2116
        %2133 = vst [vmem:[%s195 + $0x28] sm:$0xff] %v2117
        %2134 = vst [vmem:[%s195 + $0x30] sm:$0xff] %v2118
        %2135 = vst [vmem:[%s195 + $0x38] sm:$0xff] %v2119
        %2136 = vst [vmem:[%s195 + $0x40] sm:$0xff] %v2120
        %2137 = vst [vmem:[%s195 + $0x48] sm:$0xff] %v2121
        %2138 = vst [vmem:[%s195 + $0x50] sm:$0xff] %v2122
        %2139 = vst [vmem:[%s195 + $0x58] sm:$0xff] %v2123
        %2140 = vst [vmem:[%s195 + $0x60] sm:$0xff] %v2124
        %2141 = vst [vmem:[%s195 + $0x68] sm:$0xff] %v2125
        %2142 = vst [vmem:[%s195 + $0x70] sm:$0xff] %v2126
        %2143 = vst [vmem:[%s195 + $0x78] sm:$0xff] %v2127
        %s2144 = sand.u32 %s95, 1
        %s2145 = scalar_lea.sflag [#allocation4], %s2144
        %s2146 = sand.u32 %s95, 1
        %s2147 = smul.addr %s2146, 128
        %s2148 = scalar_lea.vmem [#allocation7], %s2147
        // Predicated region
        $region41: #{tpu_custom_call.1} parent=31 // pred_check
          %p2149 = pneg %p105
        $region42: #{tpu_custom_call.1} parent=31 // pred_check_branch
          %2151 = sbr.rel (%p2149) target = $region44
        $region43: #{tpu_custom_call.1} parent=31 // pred_region
          %2153 = vsyncadd %s2145, 0
          %s2154 = smul.addr %s19, 32
          %s2155 = smul.addr %s2154, 4
          %s2156 = scalar_lea.hbm %s3, %s2155
          %s2157 = sshll.u32 %s2148, 4
          %s2158 = int_to_ptr.vmem [resolvable:$true] %s2157
          %s2159 = sshll.u32 %s2156, 4
          %s2160 = int_to_ptr.hbm [resolvable:$true] %s2159
          %2165 = dma.vmem_to_hbm [thread:$0]  %s2158, 2048, %s2160, %s2145, 256, 256, 16
        $region44: #{tpu_custom_call.1} parent=31 // pred_fallthru
          _
      $region32: #{tpu_custom_call.1} parent=5 // pred_fallthru
        _
      %p2166 = scmp.le.s32.totalorder 2, %s14
      // Predicated region
      $region45: #{tpu_custom_call.1} parent=5 // pred_check
        %p2167 = pneg %p2166
      $region46: #{tpu_custom_call.1} parent=5 // pred_check_branch
        %2169 = sbr.rel (%p2167) target = $region48
      $region47: #{tpu_custom_call.1} parent=5 // pred_region
        %s2170 = ssub.s32 %s14, 2
        // Predicated region
        $region49: #{tpu_custom_call.1} parent=47 // pred_check
          %p2171 = pneg %p111
        $region50: #{tpu_custom_call.1} parent=47 // pred_check_branch
          %2173 = sbr.rel (%p2171) target = $region52
        $region51: #{tpu_custom_call.1} parent=47 // pred_region
          %s2174 = sand.u32 %s96, 1
          %s2175 = scalar_lea.sflag [#allocation4], %s2174
          %s2176 = sand.u32 %s96, 1
          %s2177 = smul.addr %s2176, 128
          %s2178 = scalar_lea.vmem [#allocation7], %s2177
          %2180 = dma.done %s2175, 2048
        $region52: #{tpu_custom_call.1} parent=47 // pred_fallthru
          _
      $region48: #{tpu_custom_call.1} parent=5 // pred_fallthru
        _
    $region6: #{tpu_custom_call.1} parent=1 // loop_footer
      %s18 = sadd.s32 1, %s14
    $region7: #{tpu_custom_call.1} parent=1 // loop_footer_branch
      %13 = sbr.rel target = $region3
    $region8: #{tpu_custom_call.1} parent=1 // loop_exit
      _
    %2181 = vsyncpa [#allocation3], 1
    %s2182 = scalar_lea.sflag [#allocation3], 1
    %2183 = vsyncpa %s2182, 1
    %2184 = vsyncpa [#allocation6], 1
    %2185 = vsyncpa [#allocation4], 1
    %s2186 = scalar_lea.sflag [#allocation4], 1
    %2187 = vsyncpa %s2186, 1

</llo_original>
